<compile_context>
chip_gen: v6e
topology: v6e:2x2x1
jax: 0.10.0
libtpu: 0.0.40
codegen_flags: <defaults>
</compile_context>

<pallas_src>
import functools
import math

import jax
import jax.numpy as jnp
from jax.experimental import pallas as pl
from jax.experimental.pallas import tpu as pltpu


def _layernorm(x, gamma, beta, eps=1e-5):
    mean = jnp.mean(x, axis=-1, keepdims=True)
    var = jnp.mean((x - mean) ** 2, axis=-1, keepdims=True)  # biased, like torch
    return (x - mean) * jax.lax.rsqrt(var + eps) * gamma + beta


def _phgt_kernel(x_ref, wqkv_ref, bqkv_ref, wo_ref, bo_ref,
                 g1_ref, be1_ref,
                 wf1_ref, bf1_ref, wf2_ref, bf2_ref,
                 g2_ref, be2_ref,
                 out_ref,
                 o_sc, y_sc, acc_sc,
                 *, seq_len, num_heads):
    f = pl.program_id(1)
    n_f = pl.num_programs(1)

    M, E = x_ref.shape               # M = block_batch * seq_len
    H = num_heads
    dh = E // H
    L = seq_len
    Bb = M // L
    cdt = wqkv_ref.dtype             # matmul compute dtype (bf16 fast path)

    # ---- f == 0: self-attention + residual + LayerNorm1 ---------------------
    @pl.when(f == 0)
    def _attention():
        x = x_ref[...]                                   # (M, E) f32
        xc = x.astype(cdt)

        # Packed Q/K/V projection: one wide (M,E)x(E,3E) MXU matmul.
        # 1/sqrt(dh) is already folded into the q columns / bias (wrapper).
        qkv = jnp.dot(xc, wqkv_ref[...],
                      preferred_element_type=jnp.float32) + bqkv_ref[...]
        q = qkv[:, :E].astype(cdt)
        k = qkv[:, E:2 * E].astype(cdt)
        v = qkv[:, 2 * E:].astype(cdt)

        # Per-head attention, batched over the Bb sequences in this block.
        # (Score / p@v contraction depth is dh regardless of batching, so a
        #  static python loop over heads costs no MXU width.)
        # TODO(synk): tile the key axis (online softmax) for long sequences.
        for h in range(H):
            sl = slice(h * dh, (h + 1) * dh)
            q_h = q[:, sl].reshape(Bb, L, dh)
            k_h = k[:, sl].reshape(Bb, L, dh)
            v_h = v[:, sl].reshape(Bb, L, dh)
            s = jnp.einsum('bld,bmd->blm', q_h, k_h,
                           preferred_element_type=jnp.float32)    # (Bb, L, L)
            s = s - jnp.max(s, axis=-1, keepdims=True)
            p = jnp.exp(s)
            p = p * pl.reciprocal(jnp.sum(p, axis=-1, keepdims=True),
                                  approx=True)
            o_h = jnp.einsum('blm,bmd->bld', p.astype(cdt), v_h,
                             preferred_element_type=jnp.float32)  # (Bb, L, dh)
            # Head-major lane slab: matches PyTorch's concat-of-heads layout.
            o_sc[:, sl] = o_h.reshape(M, dh).astype(o_sc.dtype)

        # Output projection: single K=E contraction (no per-head K=dh dots,
        # no H-1 full-tile VPU adds).
        attn = jnp.dot(o_sc[...], wo_ref[...],
                       preferred_element_type=jnp.float32) + bo_ref[...]

        y_sc[...] = _layernorm(x + attn, g1_ref[...], be1_ref[...])
        acc_sc[...] = jnp.zeros_like(acc_sc)

    # ---- every f: one (E, tF) x (tF, E) tile of the FFN ----------------------
    y = y_sc[...]                                                  # (M, E) f32
    h1 = jnp.dot(y.astype(cdt), wf1_ref[...],
                 preferred_element_type=jnp.float32) + bf1_ref[...]
    h1 = jnp.maximum(h1, 0.0)
    acc_sc[...] += jnp.dot(h1.astype(cdt), wf2_ref[...],
                           preferred_element_type=jnp.float32)

    # ---- last f: residual + LayerNorm2, store --------------------------------
    @pl.when(f == n_f - 1)
    def _finalize():
        ffn = acc_sc[...] + bf2_ref[...]
        out_ref[...] = _layernorm(y + ffn, g2_ref[...], be2_ref[...])


def _vmem_budget_bytes():
    """Physical per-core VMEM minus headroom for compiler-internal scratch."""
    cap = 64 * 1024 * 1024
    try:
        cap = int(pltpu.get_tpu_info().vmem_capacity_bytes)
    except Exception:
        pass
    return max(cap - 16 * 1024 * 1024, 32 * 1024 * 1024)


def _pick_block_batch(N, L, target_rows):
    """Largest batch block with block-rows % 8 == 0 (or the full batch) and
    rows <= target_rows; prefer a grid-step count that is a multiple of 2
    (2 TensorCores on v7x), else at least 2 steps."""
    cands = [b for b in range(1, N + 1)
             if N % b == 0 and ((b * L) % 8 == 0 or b == N)]
    small = [b for b in cands if b * L <= target_rows] or [min(cands)]
    even = [b for b in small if (N // b) % 2 == 0]
    multi = [b for b in small if N // b >= 2]
    pool = even or multi or small
    return max(pool)


def _pick_ffn_tile(E, F, MB, budget):
    """tF = F (FFN weights resident in VMEM, fetched from HBM exactly once)
    whenever it fits the budget; else the largest 128-multiple divisor of F
    that fits."""
    def cost(t):  # double-buffered bf16 weight tiles + f32 h1 temporary
        return 8 * E * t + 4 * MB * t
    if F <= 256 or cost(F) <= budget or F % 128 != 0:
        return F
    best = 128
    t = 128
    while t < F:
        if F % t == 0 and cost(t) <= budget:
            best = t
        t += 128
    return best


def init_params(key, hidden_dim):
    """Deterministic parameter init with PyTorch-convention shapes."""
    E = hidden_dim
    ks = jax.random.split(key, 12)
    std = 0.02
    return {
        # nn.MultiheadAttention
        "in_proj_weight": jax.random.normal(ks[0], (3 * E, E), jnp.float32) * std,
        "in_proj_bias":   jax.random.normal(ks[1], (3 * E,), jnp.float32) * std,
        "out_proj_weight": jax.random.normal(ks[2], (E, E), jnp.float32) * std,
        "out_proj_bias":   jax.random.normal(ks[3], (E,), jnp.float32) * std,
        # nn.LayerNorm(hidden_dim) x2
        "ln1_gamma": 1.0 + 0.1 * jax.random.normal(ks[4], (E,), jnp.float32),
        "ln1_beta":  0.1 * jax.random.normal(ks[5], (E,), jnp.float32),
        "ln2_gamma": 1.0 + 0.1 * jax.random.normal(ks[6], (E,), jnp.float32),
        "ln2_beta":  0.1 * jax.random.normal(ks[7], (E,), jnp.float32),
        # FFN: Linear(E, 4E), Linear(4E, E)
        "ffn_w1": jax.random.normal(ks[8], (4 * E, E), jnp.float32) * std,
        "ffn_b1": jax.random.normal(ks[9], (4 * E,), jnp.float32) * std,
        "ffn_w2": jax.random.normal(ks[10], (E, 4 * E), jnp.float32) * std,
        "ffn_b2": jax.random.normal(ks[11], (E,), jnp.float32) * std,
    }


def phgt_layer(x_lne, params, num_heads=4, compute_dtype=jnp.bfloat16):
    """x_lne: (L, N, E) float32, seq-first like PyTorch nn.MultiheadAttention."""
    L, N, E = x_lne.shape
    assert E % num_heads == 0
    H, dh, F = num_heads, E // num_heads, 4 * E
    scale = 1.0 / math.sqrt(dh)

    vmem_budget = _vmem_budget_bytes()
    # Rough per-row activation footprint: x/out double-buffered f32, y/acc
    # scratch f32, o_sc bf16, packed-qkv + per-head score temporaries.
    bytes_per_row = 40 * E + 8 * L
    target_rows = int(max(64, min(1024, (vmem_budget // 2) // max(bytes_per_row, 1))))
    Bb = _pick_block_batch(N, L, target_rows)
    MB = Bb * L
    nB = N // Bb
    ffn_budget = max(vmem_budget - MB * bytes_per_row, vmem_budget // 4)
    tF = _pick_ffn_tile(E, F, MB, ffn_budget)
    nF = F // tF

    # Flatten to a lane-dense (N*L, E) slab (rows contiguous per sequence).
    # TODO(synk): drop this HBM round trip if callers can provide (N, L, E).
    x2 = jnp.transpose(x_lne, (1, 0, 2)).reshape(N * L, E).astype(jnp.float32)

    cdt = compute_dtype
    ipw, ipb = params["in_proj_weight"], params["in_proj_bias"]
    wqkv_f32 = ipw.T                                   # (E, 3E): [Wq^T|Wk^T|Wv^T]
    wqkv = jnp.concatenate([wqkv_f32[:, :E] * scale, wqkv_f32[:, E:]],
                           axis=1).astype(cdt)
    bqkv = jnp.concatenate([ipb[:E] * scale, ipb[E:]]).reshape(1, 3 * E) \
        .astype(jnp.float32)
    wo = params["out_proj_weight"].T.astype(cdt)       # (E, E)
    bo = params["out_proj_bias"].reshape(1, E).astype(jnp.float32)
    g1 = params["ln1_gamma"].reshape(1, E).astype(jnp.float32)
    be1 = params["ln1_beta"].reshape(1, E).astype(jnp.float32)
    wf1 = params["ffn_w1"].T.astype(cdt)               # (E, 4E)
    bf1 = params["ffn_b1"].reshape(1, F).astype(jnp.float32)
    wf2 = params["ffn_w2"].T.astype(cdt)               # (4E, E)
    bf2 = params["ffn_b2"].reshape(1, E).astype(jnp.float32)
    g2 = params["ln2_gamma"].reshape(1, E).astype(jnp.float32)
    be2 = params["ln2_beta"].reshape(1, E).astype(jnp.float32)

    def _const(a):
        # TODO(synk): pipeline_mode=pl.Buffered(1) for grid-constant inputs.
        z = (0,) * a.ndim
        return pl.BlockSpec(a.shape, lambda b, f, _z=z: _z)

    kernel = functools.partial(_phgt_kernel, seq_len=L, num_heads=H)

    flops = (8 * N * L * E * E          # packed qkv + output projection
             + 4 * N * L * L * E        # scores + p @ v
             + 16 * N * L * E * E)      # FFN
    transcendentals = N * H * L * L     # exp in softmax
    wbytes = (wqkv.size + wo.size + wf1.size + wf2.size) * jnp.dtype(cdt).itemsize
    bytes_accessed = 2 * x2.size * 4 + wbytes

    out2 = pl.pallas_call(
        kernel,
        out_shape=jax.ShapeDtypeStruct((N * L, E), jnp.float32),
        grid_spec=pltpu.PrefetchScalarGridSpec(
            num_scalar_prefetch=0,
            grid=(nB, nF),
            in_specs=[
                pl.BlockSpec((MB, E), lambda b, f: (b, 0)),
                _const(wqkv), _const(bqkv), _const(wo), _const(bo),
                _const(g1), _const(be1),
                pl.BlockSpec((E, tF), lambda b, f: (0, f)),
                pl.BlockSpec((1, tF), lambda b, f: (0, f)),
                pl.BlockSpec((tF, E), lambda b, f: (f, 0)),
                _const(bf2),
                _const(g2), _const(be2),
            ],
            out_specs=pl.BlockSpec((MB, E), lambda b, f: (b, 0)),
            scratch_shapes=[
                pltpu.VMEM((MB, E), cdt),            # head-major attn outputs
                pltpu.VMEM((MB, E), jnp.float32),    # y = LN1(x + attn)
                pltpu.VMEM((MB, E), jnp.float32),    # FFN accumulator
            ],
        ),
        compiler_params=pltpu.CompilerParams(
            dimension_semantics=("parallel", "arbitrary"),
            vmem_limit_bytes=int(vmem_budget),
        ),
        cost_estimate=pl.CostEstimate(
            flops=int(flops),
            transcendentals=int(transcendentals),
            bytes_accessed=int(bytes_accessed),
        ),
    )(x2, wqkv, bqkv, wo, bo, g1, be1,
      wf1, bf1, wf2, bf2, g2, be2)

    return jnp.transpose(out2.reshape(N, L, E), (1, 0, 2))   # back to (L, N, E)


def phgt_layer_ref(x_lne, params, num_heads=4):
    """Pure-JAX f32 reference mirroring PyTorch semantics, for verification."""
    L, N, E = x_lne.shape
    dh = E // num_heads
    x = x_lne
    qkv = jnp.einsum("lne,fe->lnf", x, params["in_proj_weight"]) + params["in_proj_bias"]
    q, k, v = qkv[..., :E], qkv[..., E:2 * E], qkv[..., 2 * E:]

    def split(t):  # (L, N, E) -> (N, H, L, dh)
        return jnp.transpose(t.reshape(L, N, num_heads, dh), (1, 2, 0, 3))

    qh, kh, vh = split(q), split(k), split(v)
    s = jnp.einsum("nhld,nhmd->nhlm", qh, kh) / math.sqrt(dh)
    p = jax.nn.softmax(s, axis=-1)
    o = jnp.einsum("nhlm,nhmd->nhld", p, vh)
    o = jnp.transpose(o, (2, 0, 1, 3)).reshape(L, N, E)
    attn = jnp.einsum("lne,fe->lnf", o, params["out_proj_weight"]) + params["out_proj_bias"]

    def ln(t, g, b, eps=1e-5):
        m = jnp.mean(t, -1, keepdims=True)
        var = jnp.mean((t - m) ** 2, -1, keepdims=True)
        return (t - m) * jax.lax.rsqrt(var + eps) * g + b

    y = ln(x + attn, params["ln1_gamma"], params["ln1_beta"])
    h1 = jnp.maximum(jnp.einsum("lne,fe->lnf", y, params["ffn_w1"]) + params["ffn_b1"], 0.0)
    ffn = jnp.einsum("lnf,ef->lne", h1, params["ffn_w2"]) + params["ffn_b2"]
    return ln(y + ffn, params["ln2_gamma"], params["ln2_beta"])


if __name__ == "__main__":
    seq, batch, hidden, heads = 8, 2, 32, 4
    key = jax.random.PRNGKey(0)
    kx, kp = jax.random.split(key)
    x = jax.random.normal(kx, (seq, batch, hidden), jnp.float32)
    params = init_params(kp, hidden)

    out = jax.block_until_ready(phgt_layer(x, params, num_heads=heads))
    ref = jax.block_until_ready(phgt_layer_ref(x, params, num_heads=heads))

    assert out.shape == (seq, batch, hidden)
    assert out.dtype == jnp.float32
    err = float(jnp.max(jnp.abs(out - ref)))
    # bf16 matmul path vs f32 reference: allow small numerical drift.
    assert err < 2e-2, f"max err {err}"
    print("KERNEL_OK")
</pallas_src>

<mosaic_0001>
module attributes {stable_mosaic.version = 11 : i64} {
  func.func @_phgt_kernel(%arg0: i32, %arg1: i32, %arg2: memref<8x32xf32, #tpu.memory_space<vmem>>, %arg3: memref<32x96xbf16, #tpu.memory_space<vmem>>, %arg4: memref<1x96xf32, #tpu.memory_space<vmem>>, %arg5: memref<32x32xbf16, #tpu.memory_space<vmem>>, %arg6: memref<1x32xf32, #tpu.memory_space<vmem>>, %arg7: memref<1x32xf32, #tpu.memory_space<vmem>>, %arg8: memref<1x32xf32, #tpu.memory_space<vmem>>, %arg9: memref<32x128xbf16, #tpu.memory_space<vmem>>, %arg10: memref<1x128xf32, #tpu.memory_space<vmem>>, %arg11: memref<128x32xbf16, #tpu.memory_space<vmem>>, %arg12: memref<1x32xf32, #tpu.memory_space<vmem>>, %arg13: memref<1x32xf32, #tpu.memory_space<vmem>>, %arg14: memref<1x32xf32, #tpu.memory_space<vmem>>, %arg15: memref<8x32xf32, #tpu.memory_space<vmem>>, %arg16: memref<8x32xbf16, #tpu.memory_space<vmem>>, %arg17: memref<8x32xf32, #tpu.memory_space<vmem>>, %arg18: memref<8x32xf32, #tpu.memory_space<vmem>>) attributes {dimension_semantics = [#tpu.dimension_semantics<parallel>, #tpu.dimension_semantics<arbitrary>], iteration_bounds = array<i64: 2, 1>, scalar_prefetch = 0 : i64, scratch_operands = 3 : i64, tpu.core_type = #tpu.core_type<tc>, window_params = [{transform_indices = @transform_0, window_bounds = array<i64: 8, 32>}, {pipeline_mode = #tpu.pipeline_mode<synchronous>, transform_indices = @transform_1, window_bounds = array<i64: 32, 96>}, {pipeline_mode = #tpu.pipeline_mode<synchronous>, transform_indices = @transform_2, window_bounds = array<i64: 1, 96>}, {pipeline_mode = #tpu.pipeline_mode<synchronous>, transform_indices = @transform_3, window_bounds = array<i64: 32, 32>}, {pipeline_mode = #tpu.pipeline_mode<synchronous>, transform_indices = @transform_4, window_bounds = array<i64: 1, 32>}, {pipeline_mode = #tpu.pipeline_mode<synchronous>, transform_indices = @transform_5, window_bounds = array<i64: 1, 32>}, {pipeline_mode = #tpu.pipeline_mode<synchronous>, transform_indices = @transform_6, window_bounds = array<i64: 1, 32>}, {transform_indices = @transform_7, window_bounds = array<i64: 32, 128>}, {transform_indices = @transform_8, window_bounds = array<i64: 1, 128>}, {transform_indices = @transform_9, window_bounds = array<i64: 128, 32>}, {pipeline_mode = #tpu.pipeline_mode<synchronous>, transform_indices = @transform_10, window_bounds = array<i64: 1, 32>}, {pipeline_mode = #tpu.pipeline_mode<synchronous>, transform_indices = @transform_11, window_bounds = array<i64: 1, 32>}, {pipeline_mode = #tpu.pipeline_mode<synchronous>, transform_indices = @transform_12, window_bounds = array<i64: 1, 32>}, {transform_indices = @transform_13, window_bounds = array<i64: 8, 32>}]} {
    %c0_i32 = arith.constant 0 : i32
    %0 = arith.cmpi eq, %arg1, %c0_i32 : i32
    %1 = arith.extui %0 : i1 to i32
    %c0_i32_0 = arith.constant 0 : i32
    %2 = arith.cmpi ne, %1, %c0_i32_0 : i32
    scf.if %2 {
      %c0_16 = arith.constant 0 : index
      %c0_17 = arith.constant 0 : index
      %21 = vector.load %arg2[%c0_16, %c0_17] : memref<8x32xf32, #tpu.memory_space<vmem>>, vector<8x32xf32>
      %22 = arith.truncf %21 : vector<8x32xf32> to vector<8x32xbf16>
      %c0_18 = arith.constant 0 : index
      %c0_19 = arith.constant 0 : index
      %23 = vector.load %arg3[%c0_18, %c0_19] : memref<32x96xbf16, #tpu.memory_space<vmem>>, vector<32x96xbf16>
      %cst_20 = arith.constant dense<0.000000e+00> : vector<8x96xf32>
      %24 = tpu.matmul %22, %23, %cst_20 {dimension_numbers = #tpu.dot_dimension_numbers<[1], [0], [0], [1], [0, 0, 1, 1], [], []>} : vector<8x32xbf16>, vector<32x96xbf16>, vector<8x96xf32> -> vector<8x96xf32>
      %c0_21 = arith.constant 0 : index
      %c0_22 = arith.constant 0 : index
      %25 = vector.load %arg4[%c0_21, %c0_22] : memref<1x96xf32, #tpu.memory_space<vmem>>, vector<1x96xf32>
      %26 = vector.broadcast %25 : vector<1x96xf32> to vector<8x96xf32>
      %27 = arith.addf %24, %26 : vector<8x96xf32>
      %28 = vector.extract_strided_slice %27 {offsets = [0, 0], sizes = [8, 32], strides = [1, 1]} : vector<8x96xf32> to vector<8x32xf32>
      %29 = arith.truncf %28 : vector<8x32xf32> to vector<8x32xbf16>
      %30 = vector.extract_strided_slice %27 {offsets = [0, 32], sizes = [8, 32], strides = [1, 1]} : vector<8x96xf32> to vector<8x32xf32>
      %31 = arith.truncf %30 : vector<8x32xf32> to vector<8x32xbf16>
      %32 = vector.extract_strided_slice %27 {offsets = [0, 64], sizes = [8, 32], strides = [1, 1]} : vector<8x96xf32> to vector<8x32xf32>
      %33 = arith.truncf %32 : vector<8x32xf32> to vector<8x32xbf16>
      %34 = vector.extract_strided_slice %29 {offsets = [0, 0], sizes = [8, 8], strides = [1, 1]} : vector<8x32xbf16> to vector<8x8xbf16>
      %35 = vector.shape_cast %34 : vector<8x8xbf16> to vector<1x8x8xbf16>
      %36 = vector.extract_strided_slice %31 {offsets = [0, 0], sizes = [8, 8], strides = [1, 1]} : vector<8x32xbf16> to vector<8x8xbf16>
      %37 = vector.shape_cast %36 : vector<8x8xbf16> to vector<1x8x8xbf16>
      %38 = vector.extract_strided_slice %33 {offsets = [0, 0], sizes = [8, 8], strides = [1, 1]} : vector<8x32xbf16> to vector<8x8xbf16>
      %39 = vector.shape_cast %38 : vector<8x8xbf16> to vector<1x8x8xbf16>
      "tpu.trace_start"() <{level = 10 : i32, message = "bld,bmd->blm"}> : () -> ()
      %cst_23 = arith.constant dense<0.000000e+00> : vector<1x8x8xf32>
      %40 = tpu.matmul %35, %37, %cst_23 {dimension_numbers = #tpu.dot_dimension_numbers<[2], [2], [1], [1], [0, 0, 0, 1, 1, 1], [0], [0]>} : vector<1x8x8xbf16>, vector<1x8x8xbf16>, vector<1x8x8xf32> -> vector<1x8x8xf32>
      "tpu.trace_stop"() : () -> ()
      %cst_24 = arith.constant dense<0xFF800000> : vector<1x8xf32>
      %41 = vector.multi_reduction <maximumf>, %40, %cst_24 [2] : vector<1x8x8xf32> to vector<1x8xf32>
      %42 = vector.shape_cast %41 : vector<1x8xf32> to vector<1x8x1xf32>
      %43 = vector.broadcast %42 : vector<1x8x1xf32> to vector<1x8x8xf32>
      %44 = arith.subf %40, %43 : vector<1x8x8xf32>
      %45 = math.exp %44 : vector<1x8x8xf32>
      %cst_25 = arith.constant dense<0.000000e+00> : vector<1x8xf32>
      %46 = vector.multi_reduction <add>, %45, %cst_25 [2] : vector<1x8x8xf32> to vector<1x8xf32>
      %47 = vector.shape_cast %46 : vector<1x8xf32> to vector<1x8x1xf32>
      %48 = tpu.reciprocal %47 {approx = true} : vector<1x8x1xf32> -> vector<1x8x1xf32>
      %49 = vector.broadcast %48 : vector<1x8x1xf32> to vector<1x8x8xf32>
      %50 = arith.mulf %45, %49 : vector<1x8x8xf32>
      %51 = arith.truncf %50 : vector<1x8x8xf32> to vector<1x8x8xbf16>
      "tpu.trace_start"() <{level = 10 : i32, message = "blm,bmd->bld"}> : () -> ()
      %cst_26 = arith.constant dense<0.000000e+00> : vector<1x8x8xf32>
      %52 = tpu.matmul %51, %39, %cst_26 {dimension_numbers = #tpu.dot_dimension_numbers<[2], [1], [1], [2], [0, 0, 0, 1, 1, 2], [0], [0]>} : vector<1x8x8xbf16>, vector<1x8x8xbf16>, vector<1x8x8xf32> -> vector<1x8x8xf32>
      "tpu.trace_stop"() : () -> ()
      %53 = vector.shape_cast %52 : vector<1x8x8xf32> to vector<8x8xf32>
      %54 = arith.truncf %53 : vector<8x8xf32> to vector<8x8xbf16>
      %c0_27 = arith.constant 0 : index
      %c0_28 = arith.constant 0 : index
      %55 = vector.load %arg16[%c0_27, %c0_28] : memref<8x32xbf16, #tpu.memory_space<vmem>>, vector<8x8xbf16>
      tpu.vector_store %arg16[%c0_27, %c0_28], %54 {strides = array<i32>} : memref<8x32xbf16, #tpu.memory_space<vmem>>, vector<8x8xbf16>,
      %56 = vector.extract_strided_slice %29 {offsets = [0, 8], sizes = [8, 8], strides = [1, 1]} : vector<8x32xbf16> to vector<8x8xbf16>
      %57 = vector.shape_cast %56 : vector<8x8xbf16> to vector<1x8x8xbf16>
      %58 = vector.extract_strided_slice %31 {offsets = [0, 8], sizes = [8, 8], strides = [1, 1]} : vector<8x32xbf16> to vector<8x8xbf16>
      %59 = vector.shape_cast %58 : vector<8x8xbf16> to vector<1x8x8xbf16>
      %60 = vector.extract_strided_slice %33 {offsets = [0, 8], sizes = [8, 8], strides = [1, 1]} : vector<8x32xbf16> to vector<8x8xbf16>
      %61 = vector.shape_cast %60 : vector<8x8xbf16> to vector<1x8x8xbf16>
      "tpu.trace_start"() <{level = 10 : i32, message = "bld,bmd->blm"}> : () -> ()
      %cst_29 = arith.constant dense<0.000000e+00> : vector<1x8x8xf32>
      %62 = tpu.matmul %57, %59, %cst_29 {dimension_numbers = #tpu.dot_dimension_numbers<[2], [2], [1], [1], [0, 0, 0, 1, 1, 1], [0], [0]>} : vector<1x8x8xbf16>, vector<1x8x8xbf16>, vector<1x8x8xf32> -> vector<1x8x8xf32>
      "tpu.trace_stop"() : () -> ()
      %cst_30 = arith.constant dense<0xFF800000> : vector<1x8xf32>
      %63 = vector.multi_reduction <maximumf>, %62, %cst_30 [2] : vector<1x8x8xf32> to vector<1x8xf32>
      %64 = vector.shape_cast %63 : vector<1x8xf32> to vector<1x8x1xf32>
      %65 = vector.broadcast %64 : vector<1x8x1xf32> to vector<1x8x8xf32>
      %66 = arith.subf %62, %65 : vector<1x8x8xf32>
      %67 = math.exp %66 : vector<1x8x8xf32>
      %cst_31 = arith.constant dense<0.000000e+00> : vector<1x8xf32>
      %68 = vector.multi_reduction <add>, %67, %cst_31 [2] : vector<1x8x8xf32> to vector<1x8xf32>
      %69 = vector.shape_cast %68 : vector<1x8xf32> to vector<1x8x1xf32>
      %70 = tpu.reciprocal %69 {approx = true} : vector<1x8x1xf32> -> vector<1x8x1xf32>
      %71 = vector.broadcast %70 : vector<1x8x1xf32> to vector<1x8x8xf32>
      %72 = arith.mulf %67, %71 : vector<1x8x8xf32>
      %73 = arith.truncf %72 : vector<1x8x8xf32> to vector<1x8x8xbf16>
      "tpu.trace_start"() <{level = 10 : i32, message = "blm,bmd->bld"}> : () -> ()
      %cst_32 = arith.constant dense<0.000000e+00> : vector<1x8x8xf32>
      %74 = tpu.matmul %73, %61, %cst_32 {dimension_numbers = #tpu.dot_dimension_numbers<[2], [1], [1], [2], [0, 0, 0, 1, 1, 2], [0], [0]>} : vector<1x8x8xbf16>, vector<1x8x8xbf16>, vector<1x8x8xf32> -> vector<1x8x8xf32>
      "tpu.trace_stop"() : () -> ()
      %75 = vector.shape_cast %74 : vector<1x8x8xf32> to vector<8x8xf32>
      %76 = arith.truncf %75 : vector<8x8xf32> to vector<8x8xbf16>
      %c0_33 = arith.constant 0 : index
      %c8 = arith.constant 8 : index
      %77 = vector.load %arg16[%c0_33, %c8] : memref<8x32xbf16, #tpu.memory_space<vmem>>, vector<8x8xbf16>
      tpu.vector_store %arg16[%c0_33, %c8], %76 {strides = array<i32>} : memref<8x32xbf16, #tpu.memory_space<vmem>>, vector<8x8xbf16>,
      %78 = vector.extract_strided_slice %29 {offsets = [0, 16], sizes = [8, 8], strides = [1, 1]} : vector<8x32xbf16> to vector<8x8xbf16>
      %79 = vector.shape_cast %78 : vector<8x8xbf16> to vector<1x8x8xbf16>
      %80 = vector.extract_strided_slice %31 {offsets = [0, 16], sizes = [8, 8], strides = [1, 1]} : vector<8x32xbf16> to vector<8x8xbf16>
      %81 = vector.shape_cast %80 : vector<8x8xbf16> to vector<1x8x8xbf16>
      %82 = vector.extract_strided_slice %33 {offsets = [0, 16], sizes = [8, 8], strides = [1, 1]} : vector<8x32xbf16> to vector<8x8xbf16>
      %83 = vector.shape_cast %82 : vector<8x8xbf16> to vector<1x8x8xbf16>
      "tpu.trace_start"() <{level = 10 : i32, message = "bld,bmd->blm"}> : () -> ()
      %cst_34 = arith.constant dense<0.000000e+00> : vector<1x8x8xf32>
      %84 = tpu.matmul %79, %81, %cst_34 {dimension_numbers = #tpu.dot_dimension_numbers<[2], [2], [1], [1], [0, 0, 0, 1, 1, 1], [0], [0]>} : vector<1x8x8xbf16>, vector<1x8x8xbf16>, vector<1x8x8xf32> -> vector<1x8x8xf32>
      "tpu.trace_stop"() : () -> ()
      %cst_35 = arith.constant dense<0xFF800000> : vector<1x8xf32>
      %85 = vector.multi_reduction <maximumf>, %84, %cst_35 [2] : vector<1x8x8xf32> to vector<1x8xf32>
      %86 = vector.shape_cast %85 : vector<1x8xf32> to vector<1x8x1xf32>
      %87 = vector.broadcast %86 : vector<1x8x1xf32> to vector<1x8x8xf32>
      %88 = arith.subf %84, %87 : vector<1x8x8xf32>
      %89 = math.exp %88 : vector<1x8x8xf32>
      %cst_36 = arith.constant dense<0.000000e+00> : vector<1x8xf32>
      %90 = vector.multi_reduction <add>, %89, %cst_36 [2] : vector<1x8x8xf32> to vector<1x8xf32>
      %91 = vector.shape_cast %90 : vector<1x8xf32> to vector<1x8x1xf32>
      %92 = tpu.reciprocal %91 {approx = true} : vector<1x8x1xf32> -> vector<1x8x1xf32>
      %93 = vector.broadcast %92 : vector<1x8x1xf32> to vector<1x8x8xf32>
      %94 = arith.mulf %89, %93 : vector<1x8x8xf32>
      %95 = arith.truncf %94 : vector<1x8x8xf32> to vector<1x8x8xbf16>
      "tpu.trace_start"() <{level = 10 : i32, message = "blm,bmd->bld"}> : () -> ()
      %cst_37 = arith.constant dense<0.000000e+00> : vector<1x8x8xf32>
      %96 = tpu.matmul %95, %83, %cst_37 {dimension_numbers = #tpu.dot_dimension_numbers<[2], [1], [1], [2], [0, 0, 0, 1, 1, 2], [0], [0]>} : vector<1x8x8xbf16>, vector<1x8x8xbf16>, vector<1x8x8xf32> -> vector<1x8x8xf32>
      "tpu.trace_stop"() : () -> ()
      %97 = vector.shape_cast %96 : vector<1x8x8xf32> to vector<8x8xf32>
      %98 = arith.truncf %97 : vector<8x8xf32> to vector<8x8xbf16>
      %c0_38 = arith.constant 0 : index
      %c16 = arith.constant 16 : index
      %99 = vector.load %arg16[%c0_38, %c16] : memref<8x32xbf16, #tpu.memory_space<vmem>>, vector<8x8xbf16>
      tpu.vector_store %arg16[%c0_38, %c16], %98 {strides = array<i32>} : memref<8x32xbf16, #tpu.memory_space<vmem>>, vector<8x8xbf16>,
      %100 = vector.extract_strided_slice %29 {offsets = [0, 24], sizes = [8, 8], strides = [1, 1]} : vector<8x32xbf16> to vector<8x8xbf16>
      %101 = vector.shape_cast %100 : vector<8x8xbf16> to vector<1x8x8xbf16>
      %102 = vector.extract_strided_slice %31 {offsets = [0, 24], sizes = [8, 8], strides = [1, 1]} : vector<8x32xbf16> to vector<8x8xbf16>
      %103 = vector.shape_cast %102 : vector<8x8xbf16> to vector<1x8x8xbf16>
      %104 = vector.extract_strided_slice %33 {offsets = [0, 24], sizes = [8, 8], strides = [1, 1]} : vector<8x32xbf16> to vector<8x8xbf16>
      %105 = vector.shape_cast %104 : vector<8x8xbf16> to vector<1x8x8xbf16>
      "tpu.trace_start"() <{level = 10 : i32, message = "bld,bmd->blm"}> : () -> ()
      %cst_39 = arith.constant dense<0.000000e+00> : vector<1x8x8xf32>
      %106 = tpu.matmul %101, %103, %cst_39 {dimension_numbers = #tpu.dot_dimension_numbers<[2], [2], [1], [1], [0, 0, 0, 1, 1, 1], [0], [0]>} : vector<1x8x8xbf16>, vector<1x8x8xbf16>, vector<1x8x8xf32> -> vector<1x8x8xf32>
      "tpu.trace_stop"() : () -> ()
      %cst_40 = arith.constant dense<0xFF800000> : vector<1x8xf32>
      %107 = vector.multi_reduction <maximumf>, %106, %cst_40 [2] : vector<1x8x8xf32> to vector<1x8xf32>
      %108 = vector.shape_cast %107 : vector<1x8xf32> to vector<1x8x1xf32>
      %109 = vector.broadcast %108 : vector<1x8x1xf32> to vector<1x8x8xf32>
      %110 = arith.subf %106, %109 : vector<1x8x8xf32>
      %111 = math.exp %110 : vector<1x8x8xf32>
      %cst_41 = arith.constant dense<0.000000e+00> : vector<1x8xf32>
      %112 = vector.multi_reduction <add>, %111, %cst_41 [2] : vector<1x8x8xf32> to vector<1x8xf32>
      %113 = vector.shape_cast %112 : vector<1x8xf32> to vector<1x8x1xf32>
      %114 = tpu.reciprocal %113 {approx = true} : vector<1x8x1xf32> -> vector<1x8x1xf32>
      %115 = vector.broadcast %114 : vector<1x8x1xf32> to vector<1x8x8xf32>
      %116 = arith.mulf %111, %115 : vector<1x8x8xf32>
      %117 = arith.truncf %116 : vector<1x8x8xf32> to vector<1x8x8xbf16>
      "tpu.trace_start"() <{level = 10 : i32, message = "blm,bmd->bld"}> : () -> ()
      %cst_42 = arith.constant dense<0.000000e+00> : vector<1x8x8xf32>
      %118 = tpu.matmul %117, %105, %cst_42 {dimension_numbers = #tpu.dot_dimension_numbers<[2], [1], [1], [2], [0, 0, 0, 1, 1, 2], [0], [0]>} : vector<1x8x8xbf16>, vector<1x8x8xbf16>, vector<1x8x8xf32> -> vector<1x8x8xf32>
      "tpu.trace_stop"() : () -> ()
      %119 = vector.shape_cast %118 : vector<1x8x8xf32> to vector<8x8xf32>
      %120 = arith.truncf %119 : vector<8x8xf32> to vector<8x8xbf16>
      %c0_43 = arith.constant 0 : index
      %c24 = arith.constant 24 : index
      %121 = vector.load %arg16[%c0_43, %c24] : memref<8x32xbf16, #tpu.memory_space<vmem>>, vector<8x8xbf16>
      tpu.vector_store %arg16[%c0_43, %c24], %120 {strides = array<i32>} : memref<8x32xbf16, #tpu.memory_space<vmem>>, vector<8x8xbf16>,
      %c0_44 = arith.constant 0 : index
      %c0_45 = arith.constant 0 : index
      %122 = vector.load %arg16[%c0_44, %c0_45] : memref<8x32xbf16, #tpu.memory_space<vmem>>, vector<8x32xbf16>
      %c0_46 = arith.constant 0 : index
      %c0_47 = arith.constant 0 : index
      %123 = vector.load %arg5[%c0_46, %c0_47] : memref<32x32xbf16, #tpu.memory_space<vmem>>, vector<32x32xbf16>
      %cst_48 = arith.constant dense<0.000000e+00> : vector<8x32xf32>
      %124 = tpu.matmul %122, %123, %cst_48 {dimension_numbers = #tpu.dot_dimension_numbers<[1], [0], [0], [1], [0, 0, 1, 1], [], []>} : vector<8x32xbf16>, vector<32x32xbf16>, vector<8x32xf32> -> vector<8x32xf32>
      %c0_49 = arith.constant 0 : index
      %c0_50 = arith.constant 0 : index
      %125 = vector.load %arg6[%c0_49, %c0_50] : memref<1x32xf32, #tpu.memory_space<vmem>>, vector<1x32xf32>
      %126 = vector.broadcast %125 : vector<1x32xf32> to vector<8x32xf32>
      %127 = arith.addf %124, %126 : vector<8x32xf32>
      %128 = arith.addf %21, %127 : vector<8x32xf32>
      %c0_51 = arith.constant 0 : index
      %c0_52 = arith.constant 0 : index
      %129 = vector.load %arg7[%c0_51, %c0_52] : memref<1x32xf32, #tpu.memory_space<vmem>>, vector<1x32xf32>
      %c0_53 = arith.constant 0 : index
      %c0_54 = arith.constant 0 : index
      %130 = vector.load %arg8[%c0_53, %c0_54] : memref<1x32xf32, #tpu.memory_space<vmem>>, vector<1x32xf32>
      %cst_55 = arith.constant dense<0.000000e+00> : vector<8xf32>
      %131 = vector.multi_reduction <add>, %128, %cst_55 [1] : vector<8x32xf32> to vector<8xf32>
      %132 = vector.shape_cast %131 : vector<8xf32> to vector<8x1xf32>
      %cst_56 = arith.constant 3.200000e+01 : f32
      %133 = vector.broadcast %cst_56 : f32 to vector<8x1xf32>
      %134 = arith.divf %132, %133 : vector<8x1xf32>
      %135 = vector.broadcast %134 : vector<8x1xf32> to vector<8x32xf32>
      %136 = arith.subf %128, %135 : vector<8x32xf32>
      %137 = arith.mulf %136, %136 : vector<8x32xf32>
      %cst_57 = arith.constant dense<0.000000e+00> : vector<8xf32>
      %138 = vector.multi_reduction <add>, %137, %cst_57 [1] : vector<8x32xf32> to vector<8xf32>
      %139 = vector.shape_cast %138 : vector<8xf32> to vector<8x1xf32>
      %cst_58 = arith.constant 3.200000e+01 : f32
      %140 = vector.broadcast %cst_58 : f32 to vector<8x1xf32>
      %141 = arith.divf %139, %140 : vector<8x1xf32>
      %142 = vector.broadcast %134 : vector<8x1xf32> to vector<8x32xf32>
      %143 = arith.subf %128, %142 : vector<8x32xf32>
      %cst_59 = arith.constant 9.99999974E-6 : f32
      %144 = vector.broadcast %cst_59 : f32 to vector<8x1xf32>
      %145 = arith.addf %141, %144 : vector<8x1xf32>
      %146 = math.rsqrt %145 : vector<8x1xf32>
      %147 = vector.broadcast %146 : vector<8x1xf32> to vector<8x32xf32>
      %148 = arith.mulf %143, %147 : vector<8x32xf32>
      %149 = vector.broadcast %129 : vector<1x32xf32> to vector<8x32xf32>
      %150 = arith.mulf %148, %149 : vector<8x32xf32>
      %151 = vector.broadcast %130 : vector<1x32xf32> to vector<8x32xf32>
      %152 = arith.addf %150, %151 : vector<8x32xf32>
      %c0_60 = arith.constant 0 : index
      %c0_61 = arith.constant 0 : index
      %153 = vector.load %arg17[%c0_60, %c0_61] : memref<8x32xf32, #tpu.memory_space<vmem>>, vector<8x32xf32>
      tpu.vector_store %arg17[%c0_60, %c0_61], %152 {strides = array<i32>} : memref<8x32xf32, #tpu.memory_space<vmem>>, vector<8x32xf32>,
      %cst_62 = arith.constant 0.000000e+00 : f32
      %154 = vector.broadcast %cst_62 : f32 to vector<8x32xf32>
      %c0_63 = arith.constant 0 : index
      %c0_64 = arith.constant 0 : index
      %155 = vector.load %arg18[%c0_63, %c0_64] : memref<8x32xf32, #tpu.memory_space<vmem>>, vector<8x32xf32>
      tpu.vector_store %arg18[%c0_63, %c0_64], %154 {strides = array<i32>} : memref<8x32xf32, #tpu.memory_space<vmem>>, vector<8x32xf32>,
    } else {
    }
    %c0 = arith.constant 0 : index
    %c0_1 = arith.constant 0 : index
    %3 = vector.load %arg17[%c0, %c0_1] : memref<8x32xf32, #tpu.memory_space<vmem>>, vector<8x32xf32>
    %4 = arith.truncf %3 : vector<8x32xf32> to vector<8x32xbf16>
    %c0_2 = arith.constant 0 : index
    %c0_3 = arith.constant 0 : index
    %5 = vector.load %arg9[%c0_2, %c0_3] : memref<32x128xbf16, #tpu.memory_space<vmem>>, vector<32x128xbf16>
    %cst = arith.constant dense<0.000000e+00> : vector<8x128xf32>
    %6 = tpu.matmul %4, %5, %cst {dimension_numbers = #tpu.dot_dimension_numbers<[1], [0], [0], [1], [0, 0, 1, 1], [], []>} : vector<8x32xbf16>, vector<32x128xbf16>, vector<8x128xf32> -> vector<8x128xf32>
    %c0_4 = arith.constant 0 : index
    %c0_5 = arith.constant 0 : index
    %7 = vector.load %arg10[%c0_4, %c0_5] : memref<1x128xf32, #tpu.memory_space<vmem>>, vector<1x128xf32>
    %8 = vector.broadcast %7 : vector<1x128xf32> to vector<8x128xf32>
    %9 = arith.addf %6, %8 : vector<8x128xf32>
    %cst_6 = arith.constant 0.000000e+00 : f32
    %10 = vector.broadcast %cst_6 : f32 to vector<8x128xf32>
    %11 = arith.maximumf %9, %10 : vector<8x128xf32>
    %c0_7 = arith.constant 0 : index
    %c0_8 = arith.constant 0 : index
    %12 = vector.load %arg18[%c0_7, %c0_8] : memref<8x32xf32, #tpu.memory_space<vmem>>, vector<8x32xf32>
    %13 = arith.truncf %11 : vector<8x128xf32> to vector<8x128xbf16>
    %c0_9 = arith.constant 0 : index
    %c0_10 = arith.constant 0 : index
    %14 = vector.load %arg11[%c0_9, %c0_10] : memref<128x32xbf16, #tpu.memory_space<vmem>>, vector<128x32xbf16>
    %cst_11 = arith.constant dense<0.000000e+00> : vector<8x32xf32>
    %15 = tpu.matmul %13, %14, %cst_11 {dimension_numbers = #tpu.dot_dimension_numbers<[1], [0], [0], [1], [0, 0, 1, 1], [], []>} : vector<8x128xbf16>, vector<128x32xbf16>, vector<8x32xf32> -> vector<8x32xf32>
    %16 = arith.addf %12, %15 : vector<8x32xf32>
    %c0_12 = arith.constant 0 : index
    %c0_13 = arith.constant 0 : index
    %17 = vector.load %arg18[%c0_12, %c0_13] : memref<8x32xf32, #tpu.memory_space<vmem>>, vector<8x32xf32>
    tpu.vector_store %arg18[%c0_12, %c0_13], %16 {strides = array<i32>} : memref<8x32xf32, #tpu.memory_space<vmem>>, vector<8x32xf32>,
    %c0_i32_14 = arith.constant 0 : i32
    %18 = arith.cmpi eq, %arg1, %c0_i32_14 : i32
    %19 = arith.extui %18 : i1 to i32
    %c0_i32_15 = arith.constant 0 : i32
    %20 = arith.cmpi ne, %19, %c0_i32_15 : i32
    scf.if %20 {
      %c0_16 = arith.constant 0 : index
      %c0_17 = arith.constant 0 : index
      %21 = vector.load %arg18[%c0_16, %c0_17] : memref<8x32xf32, #tpu.memory_space<vmem>>, vector<8x32xf32>
      %c0_18 = arith.constant 0 : index
      %c0_19 = arith.constant 0 : index
      %22 = vector.load %arg12[%c0_18, %c0_19] : memref<1x32xf32, #tpu.memory_space<vmem>>, vector<1x32xf32>
      %23 = vector.broadcast %22 : vector<1x32xf32> to vector<8x32xf32>
      %24 = arith.addf %21, %23 : vector<8x32xf32>
      %25 = arith.addf %3, %24 : vector<8x32xf32>
      %c0_20 = arith.constant 0 : index
      %c0_21 = arith.constant 0 : index
      %26 = vector.load %arg13[%c0_20, %c0_21] : memref<1x32xf32, #tpu.memory_space<vmem>>, vector<1x32xf32>
      %c0_22 = arith.constant 0 : index
      %c0_23 = arith.constant 0 : index
      %27 = vector.load %arg14[%c0_22, %c0_23] : memref<1x32xf32, #tpu.memory_space<vmem>>, vector<1x32xf32>
      %cst_24 = arith.constant dense<0.000000e+00> : vector<8xf32>
      %28 = vector.multi_reduction <add>, %25, %cst_24 [1] : vector<8x32xf32> to vector<8xf32>
      %29 = vector.shape_cast %28 : vector<8xf32> to vector<8x1xf32>
      %cst_25 = arith.constant 3.200000e+01 : f32
      %30 = vector.broadcast %cst_25 : f32 to vector<8x1xf32>
      %31 = arith.divf %29, %30 : vector<8x1xf32>
      %32 = vector.broadcast %31 : vector<8x1xf32> to vector<8x32xf32>
      %33 = arith.subf %25, %32 : vector<8x32xf32>
      %34 = arith.mulf %33, %33 : vector<8x32xf32>
      %cst_26 = arith.constant dense<0.000000e+00> : vector<8xf32>
      %35 = vector.multi_reduction <add>, %34, %cst_26 [1] : vector<8x32xf32> to vector<8xf32>
      %36 = vector.shape_cast %35 : vector<8xf32> to vector<8x1xf32>
      %cst_27 = arith.constant 3.200000e+01 : f32
      %37 = vector.broadcast %cst_27 : f32 to vector<8x1xf32>
      %38 = arith.divf %36, %37 : vector<8x1xf32>
      %39 = vector.broadcast %31 : vector<8x1xf32> to vector<8x32xf32>
      %40 = arith.subf %25, %39 : vector<8x32xf32>
      %cst_28 = arith.constant 9.99999974E-6 : f32
      %41 = vector.broadcast %cst_28 : f32 to vector<8x1xf32>
      %42 = arith.addf %38, %41 : vector<8x1xf32>
      %43 = math.rsqrt %42 : vector<8x1xf32>
      %44 = vector.broadcast %43 : vector<8x1xf32> to vector<8x32xf32>
      %45 = arith.mulf %40, %44 : vector<8x32xf32>
      %46 = vector.broadcast %26 : vector<1x32xf32> to vector<8x32xf32>
      %47 = arith.mulf %45, %46 : vector<8x32xf32>
      %48 = vector.broadcast %27 : vector<1x32xf32> to vector<8x32xf32>
      %49 = arith.addf %47, %48 : vector<8x32xf32>
      %c0_29 = arith.constant 0 : index
      %c0_30 = arith.constant 0 : index
      %50 = vector.load %arg15[%c0_29, %c0_30] : memref<8x32xf32, #tpu.memory_space<vmem>>, vector<8x32xf32>
      tpu.vector_store %arg15[%c0_29, %c0_30], %49 {strides = array<i32>} : memref<8x32xf32, #tpu.memory_space<vmem>>, vector<8x32xf32>,
    } else {
    }
    return
  }
  func.func @transform_0(%arg0: i32, %arg1: i32) -> (i32, i32) {
    %c0_i32 = arith.constant 0 : i32
    %c0_i32_0 = arith.constant 0 : i32
    return %arg0, %c0_i32 : i32, i32
  }
  func.func @transform_1(%arg0: i32, %arg1: i32) -> (i32, i32) {
    %c0_i32 = arith.constant 0 : i32
    %c0_i32_0 = arith.constant 0 : i32
    %c0_i32_1 = arith.constant 0 : i32
    return %c0_i32, %c0_i32_0 : i32, i32
  }
  func.func @transform_2(%arg0: i32, %arg1: i32) -> (i32, i32) {
    %c0_i32 = arith.constant 0 : i32
    %c0_i32_0 = arith.constant 0 : i32
    %c0_i32_1 = arith.constant 0 : i32
    return %c0_i32, %c0_i32_0 : i32, i32
  }
  func.func @transform_3(%arg0: i32, %arg1: i32) -> (i32, i32) {
    %c0_i32 = arith.constant 0 : i32
    %c0_i32_0 = arith.constant 0 : i32
    %c0_i32_1 = arith.constant 0 : i32
    return %c0_i32, %c0_i32_0 : i32, i32
  }
  func.func @transform_4(%arg0: i32, %arg1: i32) -> (i32, i32) {
    %c0_i32 = arith.constant 0 : i32
    %c0_i32_0 = arith.constant 0 : i32
    %c0_i32_1 = arith.constant 0 : i32
    return %c0_i32, %c0_i32_0 : i32, i32
  }
  func.func @transform_5(%arg0: i32, %arg1: i32) -> (i32, i32) {
    %c0_i32 = arith.constant 0 : i32
    %c0_i32_0 = arith.constant 0 : i32
    %c0_i32_1 = arith.constant 0 : i32
    return %c0_i32, %c0_i32_0 : i32, i32
  }
  func.func @transform_6(%arg0: i32, %arg1: i32) -> (i32, i32) {
    %c0_i32 = arith.constant 0 : i32
    %c0_i32_0 = arith.constant 0 : i32
    %c0_i32_1 = arith.constant 0 : i32
    return %c0_i32, %c0_i32_0 : i32, i32
  }
  func.func @transform_7(%arg0: i32, %arg1: i32) -> (i32, i32) {
    %c0_i32 = arith.constant 0 : i32
    %c0_i32_0 = arith.constant 0 : i32
    return %c0_i32, %arg1 : i32, i32
  }
  func.func @transform_8(%arg0: i32, %arg1: i32) -> (i32, i32) {
    %c0_i32 = arith.constant 0 : i32
    %c0_i32_0 = arith.constant 0 : i32
    return %c0_i32, %arg1 : i32, i32
  }
  func.func @transform_9(%arg0: i32, %arg1: i32) -> (i32, i32) {
    %c0_i32 = arith.constant 0 : i32
    %c0_i32_0 = arith.constant 0 : i32
    return %arg1, %c0_i32 : i32, i32
  }
  func.func @transform_10(%arg0: i32, %arg1: i32) -> (i32, i32) {
    %c0_i32 = arith.constant 0 : i32
    %c0_i32_0 = arith.constant 0 : i32
    %c0_i32_1 = arith.constant 0 : i32
    return %c0_i32, %c0_i32_0 : i32, i32
  }
  func.func @transform_11(%arg0: i32, %arg1: i32) -> (i32, i32) {
    %c0_i32 = arith.constant 0 : i32
    %c0_i32_0 = arith.constant 0 : i32
    %c0_i32_1 = arith.constant 0 : i32
    return %c0_i32, %c0_i32_0 : i32, i32
  }
  func.func @transform_12(%arg0: i32, %arg1: i32) -> (i32, i32) {
    %c0_i32 = arith.constant 0 : i32
    %c0_i32_0 = arith.constant 0 : i32
    %c0_i32_1 = arith.constant 0 : i32
    return %c0_i32, %c0_i32_0 : i32, i32
  }
  func.func @transform_13(%arg0: i32, %arg1: i32) -> (i32, i32) {
    %c0_i32 = arith.constant 0 : i32
    %c0_i32_0 = arith.constant 0 : i32
    return %arg0, %c0_i32 : i32, i32
  }
}

</mosaic_0001>

<llo_original>
// kernel: tpu_custom_call.1
$region0: #{tpu_custom_call.1}
  #allocation0 [shape = 'u32[]', space=smem, size = 0x4, offset = 0x4, fixed_abs, tag = 'smem constant byte address 0x4 - core index']
  #allocation1 [shape = 'u32[144,128]{1,0:T(1,128)}', space=vmem, size = 0x12000, scoped, tag = 'internal scratch']
  #allocation2 [shape = 'bf16[8,32]{1,0:T(8,128)(2,1)}', space=vmem, size = 0x800, scoped, tag = 'scratch operand']
  #allocation3 [shape = 'f32[8,32]{1,0:T(8,128)}', space=vmem, size = 0x1000, scoped, tag = 'scratch operand']
  #allocation4 [shape = 'f32[8,32]{1,0:T(8,128)}', space=vmem, size = 0x1000, scoped, tag = 'scratch operand']
  %s0 = inlined_call_operand.vmem [shape: f32[16,32], index: 0, kind: input, shape index: {}]
  %s1 = inlined_call_operand.vmem [shape: bf16[32,96], index: 1, kind: input, shape index: {}]
  %s2 = inlined_call_operand.vmem [shape: f32[1,96], index: 2, kind: input, shape index: {}]
  %s3 = inlined_call_operand.vmem [shape: bf16[32,32], index: 3, kind: input, shape index: {}]
  %s4 = inlined_call_operand.vmem [shape: f32[1,32], index: 4, kind: input, shape index: {}]
  %s5 = inlined_call_operand.vmem [shape: f32[1,32], index: 5, kind: input, shape index: {}]
  %s6 = inlined_call_operand.vmem [shape: f32[1,32], index: 6, kind: input, shape index: {}]
  %s7 = inlined_call_operand.vmem [shape: bf16[32,128], index: 7, kind: input, shape index: {}]
  %s8 = inlined_call_operand.vmem [shape: f32[1,128], index: 8, kind: input, shape index: {}]
  %s9 = inlined_call_operand.vmem [shape: bf16[128,32], index: 9, kind: input, shape index: {}]
  %s10 = inlined_call_operand.vmem [shape: f32[1,32], index: 10, kind: input, shape index: {}]
  %s11 = inlined_call_operand.vmem [shape: f32[1,32], index: 11, kind: input, shape index: {}]
  %s12 = inlined_call_operand.vmem [shape: f32[1,32], index: 12, kind: input, shape index: {}]
  %s13 = inlined_call_operand.hbm [shape: f32[16,32], index: 13, kind: output, shape index: {}]
  %s14 = sld [smem:[#allocation0]]
  $region93: #{tpu_custom_call.1} parent=0
    _
  %s16 = ssub.s32 1, %s14
  %s17 = scalar_select 0, %s16, %s14
  $region1: #{tpu_custom_call.1} parent=0
    #allocation5 [shape = 'u8[8192]{0}', space=vmem, size = 0x2000, scoped, tag = 'output window, operand 0']
    #allocation6 [shape = 's32[2]{0}', space=sflag, size = 0x8, scoped, tag = 'scoped memory for tpu_custom_call.1']
    %18 = vsyncpa [#allocation6], 0
    %s19 = scalar_lea.sflag [#allocation6], 1
    %20 = vsyncpa %s19, 0
    loop: start=0, step=1, limit=4
    $region2: #{tpu_custom_call.1} parent=1 // loop_pre_header
      _
    $region3: #{tpu_custom_call.1} parent=1 // loop_header
      %s22 = sphi 0, %s26
      %p23 = scmp.ge.s32.totalorder %s22, 4
      %s29 = sphi 0, %s41
      %s30 = sphi 0, %s37
      %s31 = sphi 0, %s29
      %s32 = sphi 0, %s30
      %s33 = sphi 0, %s31
      %s34 = sphi 0, %s32
      %s44 = sphi 0, %s46
      %s47 = sphi 0, %s44
      %s48 = sphi 0, %s47
      %s64 = sphi 0, %s48
      %s68 = sphi 0, %s68
      %s70 = sphi 0, %s68
      %s71 = sphi 0, %s70
      %s85 = sphi 0, %s71
      %s89 = sphi 0, %s89
      %s91 = sphi 0, %s89
      %s92 = sphi 0, %s91
      %s106 = sphi 0, %s92
      %s110 = sphi 0, %s110
      %s112 = sphi 0, %s110
      %s113 = sphi 0, %s112
      %s127 = sphi 0, %s113
      %s131 = sphi 0, %s131
      %s133 = sphi 0, %s131
      %s134 = sphi 0, %s133
      %s148 = sphi 0, %s134
      %s152 = sphi 0, %s152
      %s154 = sphi 0, %s152
      %s155 = sphi 0, %s154
      %s169 = sphi 0, %s155
      %s173 = sphi 0, %s173
      %s175 = sphi 0, %s173
      %s176 = sphi 0, %s175
      %s190 = sphi 0, %s176
      %s196 = sphi 0, %s198
      %s199 = sphi 0, %s196
      %s200 = sphi 0, %s199
      %s216 = sphi 0, %s200
      %s222 = sphi 0, %s224
      %s225 = sphi 0, %s222
      %s226 = sphi 0, %s225
      %s242 = sphi 0, %s226
      %s248 = sphi 0, %s250
      %s251 = sphi 0, %s248
      %s252 = sphi 0, %s251
      %s268 = sphi 0, %s252
      %s272 = sphi 0, %s272
      %s274 = sphi 0, %s272
      %s275 = sphi 0, %s274
      %s289 = sphi 0, %s275
      %s293 = sphi 0, %s293
      %s295 = sphi 0, %s293
      %s296 = sphi 0, %s295
      %s310 = sphi 0, %s296
      %s314 = sphi 0, %s314
      %s316 = sphi 0, %s314
      %s317 = sphi 0, %s316
      %s331 = sphi 0, %s317
      %s337 = sphi 0, %s339
      %s340 = sphi 0, %s337
      %s341 = sphi 0, %s340
      %s357 = sphi 0, %s341
    $region4: #{tpu_custom_call.1} parent=1 // loop_header_branch
      %25 = sbr.rel (%p23) target = $region8
    $region5: #{tpu_custom_call.1} parent=1 // loop_body
      %s27 = ssub.s32 %s22, 1
      %s28 = ssub.s32 %s22, 2
      %s35 = sadd.s32 1, %s30
      %p36 = scmp.ge.s32.totalorder %s35, 1
      %s37 = scalar_select %p36, 0, %s35
      %s38 = sadd.s32 1, %s29
      %s39 = scalar_select %p36, %s38, %s29
      %p40 = scmp.ge.s32.totalorder %s39, 2
      %s41 = scalar_select %p40, 0, %s39
      %s42 = ssub.s32 %s29, %s41
      %p43 = scmp.eq.s32.totalorder %s42, 0
      %s45 = sadd.s32 %s44, 1
      %s46 = scalar_select %p43, %s44, %s45
      %p49 = pneg %p43
      %p50 = scmp.eq.s32.totalorder %s22, 1
      %p51 = por %p49, %p50
      %p52 = scmp.ne.s32.totalorder %s44, %s47
      %p53 = scmp.eq.s32.totalorder %s22, 0
      %p54 = por %p52, %p53
      %p55 = scmp.ne.s32.totalorder %s44, %s47
      %p56 = scmp.eq.s32.totalorder %s27, 1
      %p57 = por %p55, %p56
      %p58 = scmp.ne.s32.totalorder %s47, %s48
      %p59 = scmp.eq.s32.totalorder %s27, 0
      %p60 = por %p58, %p59
      %p61 = scmp.ne.s32.totalorder %s47, %s48
      %p62 = scmp.eq.s32.totalorder %s28, 1
      %p63 = por %p61, %p62
      %p65 = scmp.ne.s32.totalorder %s48, %s64
      %p66 = scmp.eq.s32.totalorder %s28, 0
      %p67 = por %p65, %p66
      %s69 = sadd.s32 %s68, 1
      %p72 = scmp.eq.s32.totalorder %s22, 1
      %p73 = scmp.ne.s32.totalorder %s68, %s70
      %p74 = scmp.eq.s32.totalorder %s22, 0
      %p75 = por %p73, %p74
      %p76 = scmp.ne.s32.totalorder %s68, %s70
      %p77 = scmp.eq.s32.totalorder %s27, 1
      %p78 = por %p76, %p77
      %p79 = scmp.ne.s32.totalorder %s70, %s71
      %p80 = scmp.eq.s32.totalorder %s27, 0
      %p81 = por %p79, %p80
      %p82 = scmp.ne.s32.totalorder %s70, %s71
      %p83 = scmp.eq.s32.totalorder %s28, 1
      %p84 = por %p82, %p83
      %p86 = scmp.ne.s32.totalorder %s71, %s85
      %p87 = scmp.eq.s32.totalorder %s28, 0
      %p88 = por %p86, %p87
      %s90 = sadd.s32 %s89, 1
      %p93 = scmp.eq.s32.totalorder %s22, 1
      %p94 = scmp.ne.s32.totalorder %s89, %s91
      %p95 = scmp.eq.s32.totalorder %s22, 0
      %p96 = por %p94, %p95
      %p97 = scmp.ne.s32.totalorder %s89, %s91
      %p98 = scmp.eq.s32.totalorder %s27, 1
      %p99 = por %p97, %p98
      %p100 = scmp.ne.s32.totalorder %s91, %s92
      %p101 = scmp.eq.s32.totalorder %s27, 0
      %p102 = por %p100, %p101
      %p103 = scmp.ne.s32.totalorder %s91, %s92
      %p104 = scmp.eq.s32.totalorder %s28, 1
      %p105 = por %p103, %p104
      %p107 = scmp.ne.s32.totalorder %s92, %s106
      %p108 = scmp.eq.s32.totalorder %s28, 0
      %p109 = por %p107, %p108
      %s111 = sadd.s32 %s110, 1
      %p114 = scmp.eq.s32.totalorder %s22, 1
      %p115 = scmp.ne.s32.totalorder %s110, %s112
      %p116 = scmp.eq.s32.totalorder %s22, 0
      %p117 = por %p115, %p116
      %p118 = scmp.ne.s32.totalorder %s110, %s112
      %p119 = scmp.eq.s32.totalorder %s27, 1
      %p120 = por %p118, %p119
      %p121 = scmp.ne.s32.totalorder %s112, %s113
      %p122 = scmp.eq.s32.totalorder %s27, 0
      %p123 = por %p121, %p122
      %p124 = scmp.ne.s32.totalorder %s112, %s113
      %p125 = scmp.eq.s32.totalorder %s28, 1
      %p126 = por %p124, %p125
      %p128 = scmp.ne.s32.totalorder %s113, %s127
      %p129 = scmp.eq.s32.totalorder %s28, 0
      %p130 = por %p128, %p129
      %s132 = sadd.s32 %s131, 1
      %p135 = scmp.eq.s32.totalorder %s22, 1
      %p136 = scmp.ne.s32.totalorder %s131, %s133
      %p137 = scmp.eq.s32.totalorder %s22, 0
      %p138 = por %p136, %p137
      %p139 = scmp.ne.s32.totalorder %s131, %s133
      %p140 = scmp.eq.s32.totalorder %s27, 1
      %p141 = por %p139, %p140
      %p142 = scmp.ne.s32.totalorder %s133, %s134
      %p143 = scmp.eq.s32.totalorder %s27, 0
      %p144 = por %p142, %p143
      %p145 = scmp.ne.s32.totalorder %s133, %s134
      %p146 = scmp.eq.s32.totalorder %s28, 1
      %p147 = por %p145, %p146
      %p149 = scmp.ne.s32.totalorder %s134, %s148
      %p150 = scmp.eq.s32.totalorder %s28, 0
      %p151 = por %p149, %p150
      %s153 = sadd.s32 %s152, 1
      %p156 = scmp.eq.s32.totalorder %s22, 1
      %p157 = scmp.ne.s32.totalorder %s152, %s154
      %p158 = scmp.eq.s32.totalorder %s22, 0
      %p159 = por %p157, %p158
      %p160 = scmp.ne.s32.totalorder %s152, %s154
      %p161 = scmp.eq.s32.totalorder %s27, 1
      %p162 = por %p160, %p161
      %p163 = scmp.ne.s32.totalorder %s154, %s155
      %p164 = scmp.eq.s32.totalorder %s27, 0
      %p165 = por %p163, %p164
      %p166 = scmp.ne.s32.totalorder %s154, %s155
      %p167 = scmp.eq.s32.totalorder %s28, 1
      %p168 = por %p166, %p167
      %p170 = scmp.ne.s32.totalorder %s155, %s169
      %p171 = scmp.eq.s32.totalorder %s28, 0
      %p172 = por %p170, %p171
      %s174 = sadd.s32 %s173, 1
      %p177 = scmp.eq.s32.totalorder %s22, 1
      %p178 = scmp.ne.s32.totalorder %s173, %s175
      %p179 = scmp.eq.s32.totalorder %s22, 0
      %p180 = por %p178, %p179
      %p181 = scmp.ne.s32.totalorder %s173, %s175
      %p182 = scmp.eq.s32.totalorder %s27, 1
      %p183 = por %p181, %p182
      %p184 = scmp.ne.s32.totalorder %s175, %s176
      %p185 = scmp.eq.s32.totalorder %s27, 0
      %p186 = por %p184, %p185
      %p187 = scmp.ne.s32.totalorder %s175, %s176
      %p188 = scmp.eq.s32.totalorder %s28, 1
      %p189 = por %p187, %p188
      %p191 = scmp.ne.s32.totalorder %s176, %s190
      %p192 = scmp.eq.s32.totalorder %s28, 0
      %p193 = por %p191, %p192
      %s194 = ssub.s32 %s30, %s37
      %p195 = scmp.eq.s32.totalorder %s194, 0
      %s197 = sadd.s32 %s196, 1
      %s198 = scalar_select %p195, %s196, %s197
      %p201 = pneg %p195
      %p202 = scmp.eq.s32.totalorder %s22, 1
      %p203 = por %p201, %p202
      %p204 = scmp.ne.s32.totalorder %s196, %s199
      %p205 = scmp.eq.s32.totalorder %s22, 0
      %p206 = por %p204, %p205
      %p207 = scmp.ne.s32.totalorder %s196, %s199
      %p208 = scmp.eq.s32.totalorder %s27, 1
      %p209 = por %p207, %p208
      %p210 = scmp.ne.s32.totalorder %s199, %s200
      %p211 = scmp.eq.s32.totalorder %s27, 0
      %p212 = por %p210, %p211
      %p213 = scmp.ne.s32.totalorder %s199, %s200
      %p214 = scmp.eq.s32.totalorder %s28, 1
      %p215 = por %p213, %p214
      %p217 = scmp.ne.s32.totalorder %s200, %s216
      %p218 = scmp.eq.s32.totalorder %s28, 0
      %p219 = por %p217, %p218
      %s220 = ssub.s32 %s30, %s37
      %p221 = scmp.eq.s32.totalorder %s220, 0
      %s223 = sadd.s32 %s222, 1
      %s224 = scalar_select %p221, %s222, %s223
      %p227 = pneg %p221
      %p228 = scmp.eq.s32.totalorder %s22, 1
      %p229 = por %p227, %p228
      %p230 = scmp.ne.s32.totalorder %s222, %s225
      %p231 = scmp.eq.s32.totalorder %s22, 0
      %p232 = por %p230, %p231
      %p233 = scmp.ne.s32.totalorder %s222, %s225
      %p234 = scmp.eq.s32.totalorder %s27, 1
      %p235 = por %p233, %p234
      %p236 = scmp.ne.s32.totalorder %s225, %s226
      %p237 = scmp.eq.s32.totalorder %s27, 0
      %p238 = por %p236, %p237
      %p239 = scmp.ne.s32.totalorder %s225, %s226
      %p240 = scmp.eq.s32.totalorder %s28, 1
      %p241 = por %p239, %p240
      %p243 = scmp.ne.s32.totalorder %s226, %s242
      %p244 = scmp.eq.s32.totalorder %s28, 0
      %p245 = por %p243, %p244
      %s246 = ssub.s32 %s30, %s37
      %p247 = scmp.eq.s32.totalorder %s246, 0
      %s249 = sadd.s32 %s248, 1
      %s250 = scalar_select %p247, %s248, %s249
      %p253 = pneg %p247
      %p254 = scmp.eq.s32.totalorder %s22, 1
      %p255 = por %p253, %p254
      %p256 = scmp.ne.s32.totalorder %s248, %s251
      %p257 = scmp.eq.s32.totalorder %s22, 0
      %p258 = por %p256, %p257
      %p259 = scmp.ne.s32.totalorder %s248, %s251
      %p260 = scmp.eq.s32.totalorder %s27, 1
      %p261 = por %p259, %p260
      %p262 = scmp.ne.s32.totalorder %s251, %s252
      %p263 = scmp.eq.s32.totalorder %s27, 0
      %p264 = por %p262, %p263
      %p265 = scmp.ne.s32.totalorder %s251, %s252
      %p266 = scmp.eq.s32.totalorder %s28, 1
      %p267 = por %p265, %p266
      %p269 = scmp.ne.s32.totalorder %s252, %s268
      %p270 = scmp.eq.s32.totalorder %s28, 0
      %p271 = por %p269, %p270
      %s273 = sadd.s32 %s272, 1
      %p276 = scmp.eq.s32.totalorder %s22, 1
      %p277 = scmp.ne.s32.totalorder %s272, %s274
      %p278 = scmp.eq.s32.totalorder %s22, 0
      %p279 = por %p277, %p278
      %p280 = scmp.ne.s32.totalorder %s272, %s274
      %p281 = scmp.eq.s32.totalorder %s27, 1
      %p282 = por %p280, %p281
      %p283 = scmp.ne.s32.totalorder %s274, %s275
      %p284 = scmp.eq.s32.totalorder %s27, 0
      %p285 = por %p283, %p284
      %p286 = scmp.ne.s32.totalorder %s274, %s275
      %p287 = scmp.eq.s32.totalorder %s28, 1
      %p288 = por %p286, %p287
      %p290 = scmp.ne.s32.totalorder %s275, %s289
      %p291 = scmp.eq.s32.totalorder %s28, 0
      %p292 = por %p290, %p291
      %s294 = sadd.s32 %s293, 1
      %p297 = scmp.eq.s32.totalorder %s22, 1
      %p298 = scmp.ne.s32.totalorder %s293, %s295
      %p299 = scmp.eq.s32.totalorder %s22, 0
      %p300 = por %p298, %p299
      %p301 = scmp.ne.s32.totalorder %s293, %s295
      %p302 = scmp.eq.s32.totalorder %s27, 1
      %p303 = por %p301, %p302
      %p304 = scmp.ne.s32.totalorder %s295, %s296
      %p305 = scmp.eq.s32.totalorder %s27, 0
      %p306 = por %p304, %p305
      %p307 = scmp.ne.s32.totalorder %s295, %s296
      %p308 = scmp.eq.s32.totalorder %s28, 1
      %p309 = por %p307, %p308
      %p311 = scmp.ne.s32.totalorder %s296, %s310
      %p312 = scmp.eq.s32.totalorder %s28, 0
      %p313 = por %p311, %p312
      %s315 = sadd.s32 %s314, 1
      %p318 = scmp.eq.s32.totalorder %s22, 1
      %p319 = scmp.ne.s32.totalorder %s314, %s316
      %p320 = scmp.eq.s32.totalorder %s22, 0
      %p321 = por %p319, %p320
      %p322 = scmp.ne.s32.totalorder %s314, %s316
      %p323 = scmp.eq.s32.totalorder %s27, 1
      %p324 = por %p322, %p323
      %p325 = scmp.ne.s32.totalorder %s316, %s317
      %p326 = scmp.eq.s32.totalorder %s27, 0
      %p327 = por %p325, %p326
      %p328 = scmp.ne.s32.totalorder %s316, %s317
      %p329 = scmp.eq.s32.totalorder %s28, 1
      %p330 = por %p328, %p329
      %p332 = scmp.ne.s32.totalorder %s317, %s331
      %p333 = scmp.eq.s32.totalorder %s28, 0
      %p334 = por %p332, %p333
      %s335 = ssub.s32 %s29, %s41
      %p336 = scmp.eq.s32.totalorder %s335, 0
      %s338 = sadd.s32 %s337, 1
      %s339 = scalar_select %p336, %s337, %s338
      %p342 = pneg %p336
      %p343 = scmp.eq.s32.totalorder %s22, 1
      %p344 = por %p342, %p343
      %p345 = scmp.ne.s32.totalorder %s337, %s340
      %p346 = scmp.eq.s32.totalorder %s22, 0
      %p347 = por %p345, %p346
      %p348 = scmp.ne.s32.totalorder %s337, %s340
      %p349 = scmp.eq.s32.totalorder %s27, 1
      %p350 = por %p348, %p349
      %p351 = scmp.ne.s32.totalorder %s340, %s341
      %p352 = scmp.eq.s32.totalorder %s27, 0
      %p353 = por %p351, %p352
      %p354 = scmp.ne.s32.totalorder %s340, %s341
      %p355 = scmp.eq.s32.totalorder %s28, 1
      %p356 = por %p354, %p355
      %p358 = scmp.ne.s32.totalorder %s341, %s357
      %p359 = scmp.eq.s32.totalorder %s28, 0
      %p360 = por %p358, %p359
      %p361 = scmp.le.s32.totalorder 1, %s22
      %p362 = scmp.lt.s32.totalorder %s22, 3
      %p363 = pnand %p361, %p362
      %p364 = pneg %p363
      // Predicated region
      $region9: #{tpu_custom_call.1} parent=5 // pred_check
        _
      $region10: #{tpu_custom_call.1} parent=5 // pred_check_branch
        %366 = sbr.rel (%p363) target = $region12
      $region11: #{tpu_custom_call.1} parent=5 // pred_region
        %s367 = ssub.s32 %s22, 1
        // Predicated region
        $region13: #{tpu_custom_call.1} parent=11 // pred_check
          %p368 = pneg %p81
        $region14: #{tpu_custom_call.1} parent=11 // pred_check_branch
          %370 = sbr.rel (%p368) target = $region16
        $region15: #{tpu_custom_call.1} parent=11 // pred_region
          _
        $region16: #{tpu_custom_call.1} parent=11 // pred_fallthru
          _
        // Predicated region
        $region17: #{tpu_custom_call.1} parent=11 // pred_check
          %p371 = pneg %p102
        $region18: #{tpu_custom_call.1} parent=11 // pred_check_branch
          %373 = sbr.rel (%p371) target = $region20
        $region19: #{tpu_custom_call.1} parent=11 // pred_region
          _
        $region20: #{tpu_custom_call.1} parent=11 // pred_fallthru
          _
        // Predicated region
        $region21: #{tpu_custom_call.1} parent=11 // pred_check
          %p374 = pneg %p123
        $region22: #{tpu_custom_call.1} parent=11 // pred_check_branch
          %376 = sbr.rel (%p374) target = $region24
        $region23: #{tpu_custom_call.1} parent=11 // pred_region
          _
        $region24: #{tpu_custom_call.1} parent=11 // pred_fallthru
          _
        // Predicated region
        $region25: #{tpu_custom_call.1} parent=11 // pred_check
          %p377 = pneg %p144
        $region26: #{tpu_custom_call.1} parent=11 // pred_check_branch
          %379 = sbr.rel (%p377) target = $region28
        $region27: #{tpu_custom_call.1} parent=11 // pred_region
          _
        $region28: #{tpu_custom_call.1} parent=11 // pred_fallthru
          _
        // Predicated region
        $region29: #{tpu_custom_call.1} parent=11 // pred_check
          %p380 = pneg %p165
        $region30: #{tpu_custom_call.1} parent=11 // pred_check_branch
          %382 = sbr.rel (%p380) target = $region32
        $region31: #{tpu_custom_call.1} parent=11 // pred_region
          _
        $region32: #{tpu_custom_call.1} parent=11 // pred_fallthru
          _
        // Predicated region
        $region33: #{tpu_custom_call.1} parent=11 // pred_check
          %p383 = pneg %p186
        $region34: #{tpu_custom_call.1} parent=11 // pred_check_branch
          %385 = sbr.rel (%p383) target = $region36
        $region35: #{tpu_custom_call.1} parent=11 // pred_region
          _
        $region36: #{tpu_custom_call.1} parent=11 // pred_fallthru
          _
        // Predicated region
        $region37: #{tpu_custom_call.1} parent=11 // pred_check
          %p386 = pneg %p212
        $region38: #{tpu_custom_call.1} parent=11 // pred_check_branch
          %388 = sbr.rel (%p386) target = $region40
        $region39: #{tpu_custom_call.1} parent=11 // pred_region
          %p389 = scmp.lt.s32.totalorder %s32, 0
          %s390 = scalar_select %p389, %s32, 0
          %s391 = smul.addr %s390, 4
          %s392 = scalar_lea.vmem %s7, %s391
        $region40: #{tpu_custom_call.1} parent=11 // pred_fallthru
          _
        // Predicated region
        $region41: #{tpu_custom_call.1} parent=11 // pred_check
          %p393 = pneg %p238
        $region42: #{tpu_custom_call.1} parent=11 // pred_check_branch
          %395 = sbr.rel (%p393) target = $region44
        $region43: #{tpu_custom_call.1} parent=11 // pred_region
          %p396 = scmp.lt.s32.totalorder %s32, 0
          %s397 = scalar_select %p396, %s32, 0
          %s398 = scalar_lea.vmem %s8, %s397
        $region44: #{tpu_custom_call.1} parent=11 // pred_fallthru
          _
        // Predicated region
        $region45: #{tpu_custom_call.1} parent=11 // pred_check
          %p399 = pneg %p264
        $region46: #{tpu_custom_call.1} parent=11 // pred_check_branch
          %401 = sbr.rel (%p399) target = $region48
        $region47: #{tpu_custom_call.1} parent=11 // pred_region
          %s402 = smul.u32 16, %s32
          %p403 = scmp.lt.s32.totalorder %s402, 15
          %s404 = scalar_select %p403, %s402, 15
          %s405 = smul.addr %s404, 4
          %s406 = scalar_lea.vmem %s9, %s405
          %s407 = smul.u32 16, %s32
        $region48: #{tpu_custom_call.1} parent=11 // pred_fallthru
          _
        // Predicated region
        $region49: #{tpu_custom_call.1} parent=11 // pred_check
          %p408 = pneg %p285
        $region50: #{tpu_custom_call.1} parent=11 // pred_check_branch
          %410 = sbr.rel (%p408) target = $region52
        $region51: #{tpu_custom_call.1} parent=11 // pred_region
          _
        $region52: #{tpu_custom_call.1} parent=11 // pred_fallthru
          _
        // Predicated region
        $region53: #{tpu_custom_call.1} parent=11 // pred_check
          %p411 = pneg %p306
        $region54: #{tpu_custom_call.1} parent=11 // pred_check_branch
          %413 = sbr.rel (%p411) target = $region56
        $region55: #{tpu_custom_call.1} parent=11 // pred_region
          _
        $region56: #{tpu_custom_call.1} parent=11 // pred_fallthru
          _
        // Predicated region
        $region57: #{tpu_custom_call.1} parent=11 // pred_check
          %p414 = pneg %p327
        $region58: #{tpu_custom_call.1} parent=11 // pred_check_branch
          %416 = sbr.rel (%p414) target = $region60
        $region59: #{tpu_custom_call.1} parent=11 // pred_region
          _
        $region60: #{tpu_custom_call.1} parent=11 // pred_fallthru
          _
      $region12: #{tpu_custom_call.1} parent=5 // pred_fallthru
        _
      %p417 = scmp.lt.s32.totalorder %s22, 2
      // Predicated region
      $region61: #{tpu_custom_call.1} parent=5 // pred_check
        %p418 = pneg %p417
      $region62: #{tpu_custom_call.1} parent=5 // pred_check_branch
        %420 = sbr.rel (%p418) target = $region64
      $region63: #{tpu_custom_call.1} parent=5 // pred_region
        // Predicated region
        $region65: #{tpu_custom_call.1} parent=63 // pred_check
          %p421 = pneg %p54
        $region66: #{tpu_custom_call.1} parent=63 // pred_check_branch
          %423 = sbr.rel (%p421) target = $region68
        $region67: #{tpu_custom_call.1} parent=63 // pred_region
          %p424 = scmp.lt.s32.totalorder %s29, 1
          %s425 = scalar_select %p424, %s29, 1
          %s426 = smul.addr %s425, 8
          %s427 = scalar_lea.vmem %s0, %s426
        $region68: #{tpu_custom_call.1} parent=63 // pred_fallthru
          _
      $region64: #{tpu_custom_call.1} parent=5 // pred_fallthru
        _
      %p428 = scmp.le.s32.totalorder 1, %s22
      %p429 = scmp.lt.s32.totalorder %s22, 3
      %p430 = pnand %p428, %p429
      %p431 = pneg %p430
      // Predicated region
      $region69: #{tpu_custom_call.1} parent=5 // pred_check
        _
      $region70: #{tpu_custom_call.1} parent=5 // pred_check_branch
        %433 = sbr.rel (%p430) target = $region72
      $region71: #{tpu_custom_call.1} parent=5 // pred_region
        %s434 = ssub.s32 %s22, 1
        %p435 = scmp.lt.s32.totalorder %s31, 1
        %s436 = scalar_select %p435, %s31, 1
        %s437 = smul.addr %s436, 8
        %s438 = scalar_lea.vmem %s0, %s437
        %p439 = pneg %p60
        %p440 = pneg %p57
        %p441 = pneg %p81
        %p442 = pneg %p78
        %p443 = pneg %p102
        %p444 = pneg %p99
        %p445 = pneg %p123
        %p446 = pneg %p120
        %p447 = pneg %p144
        %p448 = pneg %p141
        %p449 = pneg %p165
        %p450 = pneg %p162
        %p451 = pneg %p186
        %p452 = pneg %p183
        %p453 = scmp.lt.s32.totalorder %s32, 0
        %s454 = scalar_select %p453, %s32, 0
        %s455 = smul.addr %s454, 4
        %s456 = scalar_lea.vmem %s7, %s455
        %p457 = pneg %p212
        %p458 = pneg %p209
        %p459 = scmp.lt.s32.totalorder %s32, 0
        %s460 = scalar_select %p459, %s32, 0
        %s461 = scalar_lea.vmem %s8, %s460
        %p462 = pneg %p238
        %p463 = pneg %p235
        %s464 = smul.u32 16, %s32
        %p465 = scmp.lt.s32.totalorder %s464, 15
        %s466 = scalar_select %p465, %s464, 15
        %s467 = smul.addr %s466, 4
        %s468 = scalar_lea.vmem %s9, %s467
        %p469 = pneg %p264
        %p470 = pneg %p261
        %p471 = pneg %p285
        %p472 = pneg %p282
        %p473 = pneg %p306
        %p474 = pneg %p303
        %p475 = pneg %p327
        %p476 = pneg %p324
        %p477 = pneg %p353
        %p478 = pneg %p350
        %s479 = sand.u32 %s340, 1
        %s480 = scalar_lea.sflag [#allocation6], %s479
        %s481 = sand.u32 %s340, 1
        %s482 = smul.addr %s481, 8
        %s483 = scalar_lea.vmem [#allocation5], %s482
        %p484 = scmp.lt.s32.totalorder %s31, 1
        %s485 = scalar_select %p484, %s31, 1
        %s486 = smul.addr %s485, 8
        %s487 = scalar_lea.vmem %s0, %s486
        %p488 = scmp.lt.s32.totalorder %s32, 0
        %s489 = scalar_select %p488, %s32, 0
        %s490 = smul.addr %s489, 4
        %s491 = scalar_lea.vmem %s7, %s490
        %p492 = scmp.lt.s32.totalorder %s32, 0
        %s493 = scalar_select %p492, %s32, 0
        %s494 = scalar_lea.vmem %s8, %s493
        %s495 = smul.u32 16, %s32
        %p496 = scmp.lt.s32.totalorder %s495, 15
        %s497 = scalar_select %p496, %s495, 15
        %s498 = smul.addr %s497, 4
        %s499 = scalar_lea.vmem %s9, %s498
        %s500 = smul.u32 16, %s32
        %p502 = scmp.eq.s32.totalorder %s32, 0
        // Predicated region
        $region73: #{tpu_custom_call.1} parent=71 // pred_check
          %p503 = pneg %p502
        $region74: #{tpu_custom_call.1} parent=71 // pred_check_branch
          %505 = sbr.rel (%p503) target = $region76
        $region75: #{tpu_custom_call.1} parent=71 // pred_region
          %v506 = vld [vmem:[%s487] sm:$0xff]
          %v507 = vpack.c.bf16 %v506, %v506
          %v508 = vld [vmem:[%s1] sm:$0xf]
          %v509 = vld [vmem:[%s1 + $0x4] sm:$0xf]
          %v510 = vld [vmem:[%s1 + $0x8] sm:$0xf]
          %v511 = vld [vmem:[%s1 + $0xc] sm:$0xf]
          %v512 = vld [vmem:[%s2] sm:$0x1]
          %v514 = vlaneseq
          %v515 = vshrl.u32 %v514, 7
          %v516 = vsub.s32 0, %v515
          %v517 = vrot.slane %v512, %v516
          %v523 = vunpack.c.l.b16 %v508
          %v524 = vunpack.c.l.b16 %v509
          %v525 = vunpack.c.l.b16 %v510
          %v526 = vunpack.c.l.b16 %v511
          %v527 = vpack.c.b16 %v524, %v523
          %v528 = vpack.c.b16 %v526, %v525
          %vm531 = vcmask 261120
          %v533 = vsel %vm531, %v507, 0
          %535 = vmatprep.subr.bf16.mxu0 0
          %536 = vmatpush1.bf16.msra.mxu0 0
          %537 = vmatprep.subr.bf16.mxu0 0
          %538 = vmatpush1.bf16.msra.mxu0 0
          %539 = vmatprep.subr.bf16.mxu0 0
          %540 = vmatpush1.bf16.msra.mxu0 0
          %541 = vmatprep.subr.bf16.mxu0 0
          %542 = vmatpush1.bf16.msra.mxu0 0
          %543 = vmatprep.subr.bf16.mxu0 0
          %544 = vmatpush1.bf16.msra.mxu0 0
          %545 = vmatprep.subr.bf16.mxu0 0
          %546 = vmatpush1.bf16.msra.mxu0 0
          %547 = vmatprep.subr.bf16.mxu0 0
          %548 = vmatpush1.bf16.msra.mxu0 %v528
          %549 = vmatprep.subr.bf16.mxu0 0
          %550 = vmatpush1.bf16.msra.mxu0 %v527
          %551 = vmatprep.subr.bf16.mxu0 0
          %552 = vmatpush2.bf16.msra.mxu0 0
          %553 = vmatprep.subr.bf16.mxu0 0
          %554 = vmatpush2.bf16.msra.mxu0 0
          %555 = vmatprep.subr.bf16.mxu0 0
          %556 = vmatpush2.bf16.msra.mxu0 0
          %557 = vmatprep.subr.bf16.mxu0 0
          %558 = vmatpush2.bf16.msra.mxu0 0
          %559 = vmatprep.subr.bf16.mxu0 0
          %560 = vmatpush2.bf16.msra.mxu0 0
          %561 = vmatprep.subr.bf16.mxu0 0
          %562 = vmatpush2.bf16.msra.mxu0 0
          %563 = vmatprep.subr.bf16.mxu0 0
          %564 = vmatpush2.bf16.msra.mxu0 0
          %565 = vmatprep.subr.bf16.mxu0 0
          %566 = vmatpush2.bf16.msra.mxu0 0
          %567 = vmatprep.mubr.bf16.mxu0 0
          %568 = vmatmul.mubr.bf16.gmra.mxu0 %v533
          %v569 = vpop.f32.mrf.mxu0
          %v570 = vadd.f32 %v517, %v569
          %v571 = vpop.f32.mrf.mxu0
          %v572 = vpop.f32.mrf.mxu0
          %v573 = vpop.f32.mrf.mxu0
          %574 = vdwg.mxu0
          %v575 = vpack.c.bf16 %v570, %v570
          %577 = vrot.lane.b32.xlu0 %v575, 96
          %v578 = vpop.permute.xlu0 %577
          %vm579 = vcmask 64512
          %v581 = vsel %vm579, %v575, 0
          %v584 = vsel %vm579, %v578, 0
          %586 = vmatprep.subr.bf16.mxu0 0
          %587 = vmatpush1.bf16.xpose.msra.mxu0 0
          %588 = vmatprep.subr.bf16.mxu0 0
          %589 = vmatpush1.bf16.xpose.msra.mxu0 0
          %590 = vmatprep.subr.bf16.mxu0 0
          %591 = vmatpush1.bf16.xpose.msra.mxu0 0
          %592 = vmatprep.subr.bf16.mxu0 0
          %593 = vmatpush1.bf16.xpose.msra.mxu0 0
          %594 = vmatprep.subr.bf16.mxu0 0
          %595 = vmatpush1.bf16.xpose.msra.mxu0 0
          %596 = vmatprep.subr.bf16.mxu0 0
          %597 = vmatpush1.bf16.xpose.msra.mxu0 0
          %598 = vmatprep.subr.bf16.mxu0 0
          %599 = vmatpush1.bf16.xpose.msra.mxu0 0
          %600 = vmatprep.subr.bf16.mxu0 0
          %601 = vmatpush1.bf16.xpose.msra.mxu0 %v584
          %602 = vmatprep.subr.bf16.mxu0 0
          %603 = vmatpush2.bf16.xpose.msra.mxu0 0
          %604 = vmatprep.subr.bf16.mxu0 0
          %605 = vmatpush2.bf16.xpose.msra.mxu0 0
          %606 = vmatprep.subr.bf16.mxu0 0
          %607 = vmatpush2.bf16.xpose.msra.mxu0 0
          %608 = vmatprep.subr.bf16.mxu0 0
          %609 = vmatpush2.bf16.xpose.msra.mxu0 0
          %610 = vmatprep.subr.bf16.mxu0 0
          %611 = vmatpush2.bf16.xpose.msra.mxu0 0
          %612 = vmatprep.subr.bf16.mxu0 0
          %613 = vmatpush2.bf16.xpose.msra.mxu0 0
          %614 = vmatprep.subr.bf16.mxu0 0
          %615 = vmatpush2.bf16.xpose.msra.mxu0 0
          %616 = vmatprep.subr.bf16.mxu0 0
          %617 = vmatpush2.bf16.xpose.msra.mxu0 0
          %618 = vmatprep.mubr.bf16.mxu0 0
          %619 = vmatmul.mubr.bf16.gmra.mxu0 %v581
          %v620 = vpop.f32.mrf.mxu0
          %v621 = vadd.f32 0.0, %v620
          %v622 = vpop.f32.mrf.mxu0
          %v623 = vpop.f32.mrf.mxu0
          %v624 = vpop.f32.mrf.mxu0
          %625 = vdwg.mxu0
          %v626 = vsel %vm579, %v621, -inf
          %627 = vmax.xlane.f32.xlu0 %v626
          %v628 = vpop.xlane.xlu0 %627
          %v629 = vsub.f32 %v621, %v628
          %v630 = vmul.f32 %v629, 1.442695
          %v631 = vpow.pop %v630
          %v632 = vsel %vm579, %v631, 0.0
          %633 = vadd.xlane.f32.xlu0 %v632
          %v634 = vpop.xlane.xlu0 %633
          %v635 = vrcp.pop %v634
          %v636 = vmul.f32 %v631, %v635
          %v637 = vpack.c.bf16 %v636, %v636
          %638 = vrot.lane.b32.xlu0 %v575, 64
          %v639 = vpop.permute.xlu0 %638
          %v641 = vsel %vm579, %v637, 0
          %vm643 = vcmask 1043456
          %v645 = vsel %vm643, %v639, 0
          %647 = vmatprep.subr.bf16.mxu0 0
          %648 = vmatpush1.bf16.msra.mxu0 0
          %649 = vmatprep.subr.bf16.mxu0 0
          %650 = vmatpush1.bf16.msra.mxu0 0
          %651 = vmatprep.subr.bf16.mxu0 0
          %652 = vmatpush1.bf16.msra.mxu0 0
          %653 = vmatprep.subr.bf16.mxu0 0
          %654 = vmatpush1.bf16.msra.mxu0 0
          %655 = vmatprep.subr.bf16.mxu0 0
          %656 = vmatpush1.bf16.msra.mxu0 0
          %657 = vmatprep.subr.bf16.mxu0 0
          %658 = vmatpush1.bf16.msra.mxu0 0
          %659 = vmatprep.subr.bf16.mxu0 0
          %660 = vmatpush1.bf16.msra.mxu0 0
          %661 = vmatprep.subr.bf16.mxu0 0
          %662 = vmatpush1.bf16.msra.mxu0 %v645
          %663 = vmatprep.subr.bf16.mxu0 0
          %664 = vmatpush2.bf16.msra.mxu0 0
          %665 = vmatprep.subr.bf16.mxu0 0
          %666 = vmatpush2.bf16.msra.mxu0 0
          %667 = vmatprep.subr.bf16.mxu0 0
          %668 = vmatpush2.bf16.msra.mxu0 0
          %669 = vmatprep.subr.bf16.mxu0 0
          %670 = vmatpush2.bf16.msra.mxu0 0
          %671 = vmatprep.subr.bf16.mxu0 0
          %672 = vmatpush2.bf16.msra.mxu0 0
          %673 = vmatprep.subr.bf16.mxu0 0
          %674 = vmatpush2.bf16.msra.mxu0 0
          %675 = vmatprep.subr.bf16.mxu0 0
          %676 = vmatpush2.bf16.msra.mxu0 0
          %677 = vmatprep.subr.bf16.mxu0 0
          %678 = vmatpush2.bf16.msra.mxu0 0
          %679 = vmatprep.mubr.bf16.mxu0 0
          %680 = vmatmul.mubr.bf16.gmra.mxu0 %v641
          %v681 = vpop.f32.mrf.mxu0
          %v682 = vadd.f32 0.0, %v681
          %v683 = vpop.f32.mrf.mxu0
          %v684 = vpop.f32.mrf.mxu0
          %v685 = vpop.f32.mrf.mxu0
          %686 = vdwg.mxu0
          %v687 = vpack.c.bf16 %v682, %v682
          %vm688 = vcmask 60416
          %689 = vst.msk [vmem:[#allocation2] sm:$0xf] %vm688, %v687
          %690 = vrot.lane.b32.xlu0 %v575, 120
          %v691 = vpop.permute.xlu0 %690
          %692 = vrot.lane.b32.xlu0 %v575, 88
          %v693 = vpop.permute.xlu0 %692
          %v695 = vsel %vm579, %v691, 0
          %v698 = vsel %vm579, %v693, 0
          %700 = vmatprep.subr.bf16.mxu0 0
          %701 = vmatpush1.bf16.xpose.msra.mxu0 0
          %702 = vmatprep.subr.bf16.mxu0 0
          %703 = vmatpush1.bf16.xpose.msra.mxu0 0
          %704 = vmatprep.subr.bf16.mxu0 0
          %705 = vmatpush1.bf16.xpose.msra.mxu0 0
          %706 = vmatprep.subr.bf16.mxu0 0
          %707 = vmatpush1.bf16.xpose.msra.mxu0 0
          %708 = vmatprep.subr.bf16.mxu0 0
          %709 = vmatpush1.bf16.xpose.msra.mxu0 0
          %710 = vmatprep.subr.bf16.mxu0 0
          %711 = vmatpush1.bf16.xpose.msra.mxu0 0
          %712 = vmatprep.subr.bf16.mxu0 0
          %713 = vmatpush1.bf16.xpose.msra.mxu0 0
          %714 = vmatprep.subr.bf16.mxu0 0
          %715 = vmatpush1.bf16.xpose.msra.mxu0 %v698
          %716 = vmatprep.subr.bf16.mxu0 0
          %717 = vmatpush2.bf16.xpose.msra.mxu0 0
          %718 = vmatprep.subr.bf16.mxu0 0
          %719 = vmatpush2.bf16.xpose.msra.mxu0 0
          %720 = vmatprep.subr.bf16.mxu0 0
          %721 = vmatpush2.bf16.xpose.msra.mxu0 0
          %722 = vmatprep.subr.bf16.mxu0 0
          %723 = vmatpush2.bf16.xpose.msra.mxu0 0
          %724 = vmatprep.subr.bf16.mxu0 0
          %725 = vmatpush2.bf16.xpose.msra.mxu0 0
          %726 = vmatprep.subr.bf16.mxu0 0
          %727 = vmatpush2.bf16.xpose.msra.mxu0 0
          %728 = vmatprep.subr.bf16.mxu0 0
          %729 = vmatpush2.bf16.xpose.msra.mxu0 0
          %730 = vmatprep.subr.bf16.mxu0 0
          %731 = vmatpush2.bf16.xpose.msra.mxu0 0
          %732 = vmatprep.mubr.bf16.mxu0 0
          %733 = vmatmul.mubr.bf16.gmra.mxu0 %v695
          %v734 = vpop.f32.mrf.mxu0
          %v735 = vadd.f32 0.0, %v734
          %v736 = vpop.f32.mrf.mxu0
          %v737 = vpop.f32.mrf.mxu0
          %v738 = vpop.f32.mrf.mxu0
          %739 = vdwg.mxu0
          %v740 = vsel %vm579, %v735, -inf
          %741 = vmax.xlane.f32.xlu0 %v740
          %v742 = vpop.xlane.xlu0 %741
          %v743 = vsub.f32 %v735, %v742
          %v744 = vmul.f32 %v743, 1.442695
          %v745 = vpow.pop %v744
          %v746 = vsel %vm579, %v745, 0.0
          %747 = vadd.xlane.f32.xlu0 %v746
          %v748 = vpop.xlane.xlu0 %747
          %v749 = vrcp.pop %v748
          %v750 = vmul.f32 %v745, %v749
          %v751 = vpack.c.bf16 %v750, %v750
          %752 = vrot.lane.b32.xlu0 %v575, 56
          %v753 = vpop.permute.xlu0 %752
          %v755 = vsel %vm579, %v751, 0
          %v758 = vsel %vm643, %v753, 0
          %760 = vmatprep.subr.bf16.mxu0 0
          %761 = vmatpush1.bf16.msra.mxu0 0
          %762 = vmatprep.subr.bf16.mxu0 0
          %763 = vmatpush1.bf16.msra.mxu0 0
          %764 = vmatprep.subr.bf16.mxu0 0
          %765 = vmatpush1.bf16.msra.mxu0 0
          %766 = vmatprep.subr.bf16.mxu0 0
          %767 = vmatpush1.bf16.msra.mxu0 0
          %768 = vmatprep.subr.bf16.mxu0 0
          %769 = vmatpush1.bf16.msra.mxu0 0
          %770 = vmatprep.subr.bf16.mxu0 0
          %771 = vmatpush1.bf16.msra.mxu0 0
          %772 = vmatprep.subr.bf16.mxu0 0
          %773 = vmatpush1.bf16.msra.mxu0 0
          %774 = vmatprep.subr.bf16.mxu0 0
          %775 = vmatpush1.bf16.msra.mxu0 %v758
          %776 = vmatprep.subr.bf16.mxu0 0
          %777 = vmatpush2.bf16.msra.mxu0 0
          %778 = vmatprep.subr.bf16.mxu0 0
          %779 = vmatpush2.bf16.msra.mxu0 0
          %780 = vmatprep.subr.bf16.mxu0 0
          %781 = vmatpush2.bf16.msra.mxu0 0
          %782 = vmatprep.subr.bf16.mxu0 0
          %783 = vmatpush2.bf16.msra.mxu0 0
          %784 = vmatprep.subr.bf16.mxu0 0
          %785 = vmatpush2.bf16.msra.mxu0 0
          %786 = vmatprep.subr.bf16.mxu0 0
          %787 = vmatpush2.bf16.msra.mxu0 0
          %788 = vmatprep.subr.bf16.mxu0 0
          %789 = vmatpush2.bf16.msra.mxu0 0
          %790 = vmatprep.subr.bf16.mxu0 0
          %791 = vmatpush2.bf16.msra.mxu0 0
          %792 = vmatprep.mubr.bf16.mxu0 0
          %793 = vmatmul.mubr.bf16.gmra.mxu0 %v755
          %v794 = vpop.f32.mrf.mxu0
          %v795 = vadd.f32 0.0, %v794
          %v796 = vpop.f32.mrf.mxu0
          %v797 = vpop.f32.mrf.mxu0
          %v798 = vpop.f32.mrf.mxu0
          %799 = vdwg.mxu0
          %v800 = vpack.c.bf16 %v795, %v795
          %v802 = vunpack.c.l.b16 %v800
          %v803 = vpack.c.b16 %v802, %v802
          %804 = vrot.lane.b32.xlu0 %v803, 8
          %v805 = vpop.permute.xlu0 %804
          %vm807 = vcmask 126016
          %808 = vst.msk [vmem:[#allocation2] sm:$0xf] %vm807, %v805
          %809 = vrot.lane.b32.xlu0 %v575, 112
          %v810 = vpop.permute.xlu0 %809
          %811 = vrot.lane.b32.xlu0 %v575, 80
          %v812 = vpop.permute.xlu0 %811
          %v814 = vsel %vm579, %v810, 0
          %v817 = vsel %vm579, %v812, 0
          %819 = vmatprep.subr.bf16.mxu0 0
          %820 = vmatpush1.bf16.xpose.msra.mxu0 0
          %821 = vmatprep.subr.bf16.mxu0 0
          %822 = vmatpush1.bf16.xpose.msra.mxu0 0
          %823 = vmatprep.subr.bf16.mxu0 0
          %824 = vmatpush1.bf16.xpose.msra.mxu0 0
          %825 = vmatprep.subr.bf16.mxu0 0
          %826 = vmatpush1.bf16.xpose.msra.mxu0 0
          %827 = vmatprep.subr.bf16.mxu0 0
          %828 = vmatpush1.bf16.xpose.msra.mxu0 0
          %829 = vmatprep.subr.bf16.mxu0 0
          %830 = vmatpush1.bf16.xpose.msra.mxu0 0
          %831 = vmatprep.subr.bf16.mxu0 0
          %832 = vmatpush1.bf16.xpose.msra.mxu0 0
          %833 = vmatprep.subr.bf16.mxu0 0
          %834 = vmatpush1.bf16.xpose.msra.mxu0 %v817
          %835 = vmatprep.subr.bf16.mxu0 0
          %836 = vmatpush2.bf16.xpose.msra.mxu0 0
          %837 = vmatprep.subr.bf16.mxu0 0
          %838 = vmatpush2.bf16.xpose.msra.mxu0 0
          %839 = vmatprep.subr.bf16.mxu0 0
          %840 = vmatpush2.bf16.xpose.msra.mxu0 0
          %841 = vmatprep.subr.bf16.mxu0 0
          %842 = vmatpush2.bf16.xpose.msra.mxu0 0
          %843 = vmatprep.subr.bf16.mxu0 0
          %844 = vmatpush2.bf16.xpose.msra.mxu0 0
          %845 = vmatprep.subr.bf16.mxu0 0
          %846 = vmatpush2.bf16.xpose.msra.mxu0 0
          %847 = vmatprep.subr.bf16.mxu0 0
          %848 = vmatpush2.bf16.xpose.msra.mxu0 0
          %849 = vmatprep.subr.bf16.mxu0 0
          %850 = vmatpush2.bf16.xpose.msra.mxu0 0
          %851 = vmatprep.mubr.bf16.mxu0 0
          %852 = vmatmul.mubr.bf16.gmra.mxu0 %v814
          %v853 = vpop.f32.mrf.mxu0
          %v854 = vadd.f32 0.0, %v853
          %v855 = vpop.f32.mrf.mxu0
          %v856 = vpop.f32.mrf.mxu0
          %v857 = vpop.f32.mrf.mxu0
          %858 = vdwg.mxu0
          %v859 = vsel %vm579, %v854, -inf
          %860 = vmax.xlane.f32.xlu0 %v859
          %v861 = vpop.xlane.xlu0 %860
          %v862 = vsub.f32 %v854, %v861
          %v863 = vmul.f32 %v862, 1.442695
          %v864 = vpow.pop %v863
          %v865 = vsel %vm579, %v864, 0.0
          %866 = vadd.xlane.f32.xlu0 %v865
          %v867 = vpop.xlane.xlu0 %866
          %v868 = vrcp.pop %v867
          %v869 = vmul.f32 %v864, %v868
          %v870 = vpack.c.bf16 %v869, %v869
          %871 = vrot.lane.b32.xlu0 %v575, 48
          %v872 = vpop.permute.xlu0 %871
          %v874 = vsel %vm579, %v870, 0
          %v877 = vsel %vm643, %v872, 0
          %879 = vmatprep.subr.bf16.mxu0 0
          %880 = vmatpush1.bf16.msra.mxu0 0
          %881 = vmatprep.subr.bf16.mxu0 0
          %882 = vmatpush1.bf16.msra.mxu0 0
          %883 = vmatprep.subr.bf16.mxu0 0
          %884 = vmatpush1.bf16.msra.mxu0 0
          %885 = vmatprep.subr.bf16.mxu0 0
          %886 = vmatpush1.bf16.msra.mxu0 0
          %887 = vmatprep.subr.bf16.mxu0 0
          %888 = vmatpush1.bf16.msra.mxu0 0
          %889 = vmatprep.subr.bf16.mxu0 0
          %890 = vmatpush1.bf16.msra.mxu0 0
          %891 = vmatprep.subr.bf16.mxu0 0
          %892 = vmatpush1.bf16.msra.mxu0 0
          %893 = vmatprep.subr.bf16.mxu0 0
          %894 = vmatpush1.bf16.msra.mxu0 %v877
          %895 = vmatprep.subr.bf16.mxu0 0
          %896 = vmatpush2.bf16.msra.mxu0 0
          %897 = vmatprep.subr.bf16.mxu0 0
          %898 = vmatpush2.bf16.msra.mxu0 0
          %899 = vmatprep.subr.bf16.mxu0 0
          %900 = vmatpush2.bf16.msra.mxu0 0
          %901 = vmatprep.subr.bf16.mxu0 0
          %902 = vmatpush2.bf16.msra.mxu0 0
          %903 = vmatprep.subr.bf16.mxu0 0
          %904 = vmatpush2.bf16.msra.mxu0 0
          %905 = vmatprep.subr.bf16.mxu0 0
          %906 = vmatpush2.bf16.msra.mxu0 0
          %907 = vmatprep.subr.bf16.mxu0 0
          %908 = vmatpush2.bf16.msra.mxu0 0
          %909 = vmatprep.subr.bf16.mxu0 0
          %910 = vmatpush2.bf16.msra.mxu0 0
          %911 = vmatprep.mubr.bf16.mxu0 0
          %912 = vmatmul.mubr.bf16.gmra.mxu0 %v874
          %v913 = vpop.f32.mrf.mxu0
          %v914 = vadd.f32 0.0, %v913
          %v915 = vpop.f32.mrf.mxu0
          %v916 = vpop.f32.mrf.mxu0
          %v917 = vpop.f32.mrf.mxu0
          %918 = vdwg.mxu0
          %v919 = vpack.c.bf16 %v914, %v914
          %v921 = vunpack.c.l.b16 %v919
          %v922 = vpack.c.b16 %v921, %v921
          %923 = vrot.lane.b32.xlu0 %v922, 16
          %v924 = vpop.permute.xlu0 %923
          %vm926 = vcmask 191616
          %927 = vst.msk [vmem:[#allocation2] sm:$0xf] %vm926, %v924
          %928 = vrot.lane.b32.xlu0 %v575, 104
          %v929 = vpop.permute.xlu0 %928
          %930 = vrot.lane.b32.xlu0 %v575, 72
          %v931 = vpop.permute.xlu0 %930
          %v933 = vsel %vm579, %v929, 0
          %v936 = vsel %vm579, %v931, 0
          %938 = vmatprep.subr.bf16.mxu0 0
          %939 = vmatpush1.bf16.xpose.msra.mxu0 0
          %940 = vmatprep.subr.bf16.mxu0 0
          %941 = vmatpush1.bf16.xpose.msra.mxu0 0
          %942 = vmatprep.subr.bf16.mxu0 0
          %943 = vmatpush1.bf16.xpose.msra.mxu0 0
          %944 = vmatprep.subr.bf16.mxu0 0
          %945 = vmatpush1.bf16.xpose.msra.mxu0 0
          %946 = vmatprep.subr.bf16.mxu0 0
          %947 = vmatpush1.bf16.xpose.msra.mxu0 0
          %948 = vmatprep.subr.bf16.mxu0 0
          %949 = vmatpush1.bf16.xpose.msra.mxu0 0
          %950 = vmatprep.subr.bf16.mxu0 0
          %951 = vmatpush1.bf16.xpose.msra.mxu0 0
          %952 = vmatprep.subr.bf16.mxu0 0
          %953 = vmatpush1.bf16.xpose.msra.mxu0 %v936
          %954 = vmatprep.subr.bf16.mxu0 0
          %955 = vmatpush2.bf16.xpose.msra.mxu0 0
          %956 = vmatprep.subr.bf16.mxu0 0
          %957 = vmatpush2.bf16.xpose.msra.mxu0 0
          %958 = vmatprep.subr.bf16.mxu0 0
          %959 = vmatpush2.bf16.xpose.msra.mxu0 0
          %960 = vmatprep.subr.bf16.mxu0 0
          %961 = vmatpush2.bf16.xpose.msra.mxu0 0
          %962 = vmatprep.subr.bf16.mxu0 0
          %963 = vmatpush2.bf16.xpose.msra.mxu0 0
          %964 = vmatprep.subr.bf16.mxu0 0
          %965 = vmatpush2.bf16.xpose.msra.mxu0 0
          %966 = vmatprep.subr.bf16.mxu0 0
          %967 = vmatpush2.bf16.xpose.msra.mxu0 0
          %968 = vmatprep.subr.bf16.mxu0 0
          %969 = vmatpush2.bf16.xpose.msra.mxu0 0
          %970 = vmatprep.mubr.bf16.mxu0 0
          %971 = vmatmul.mubr.bf16.gmra.mxu0 %v933
          %v972 = vpop.f32.mrf.mxu0
          %v973 = vadd.f32 0.0, %v972
          %v974 = vpop.f32.mrf.mxu0
          %v975 = vpop.f32.mrf.mxu0
          %v976 = vpop.f32.mrf.mxu0
          %977 = vdwg.mxu0
          %v978 = vsel %vm579, %v973, -inf
          %979 = vmax.xlane.f32.xlu0 %v978
          %v980 = vpop.xlane.xlu0 %979
          %v981 = vsub.f32 %v973, %v980
          %v982 = vmul.f32 %v981, 1.442695
          %v983 = vpow.pop %v982
          %v984 = vsel %vm579, %v983, 0.0
          %985 = vadd.xlane.f32.xlu0 %v984
          %v986 = vpop.xlane.xlu0 %985
          %v987 = vrcp.pop %v986
          %v988 = vmul.f32 %v983, %v987
          %v989 = vpack.c.bf16 %v988, %v988
          %990 = vrot.lane.b32.xlu0 %v575, 40
          %v991 = vpop.permute.xlu0 %990
          %v993 = vsel %vm579, %v989, 0
          %v996 = vsel %vm643, %v991, 0
          %998 = vmatprep.subr.bf16.mxu0 0
          %999 = vmatpush1.bf16.msra.mxu0 0
          %1000 = vmatprep.subr.bf16.mxu0 0
          %1001 = vmatpush1.bf16.msra.mxu0 0
          %1002 = vmatprep.subr.bf16.mxu0 0
          %1003 = vmatpush1.bf16.msra.mxu0 0
          %1004 = vmatprep.subr.bf16.mxu0 0
          %1005 = vmatpush1.bf16.msra.mxu0 0
          %1006 = vmatprep.subr.bf16.mxu0 0
          %1007 = vmatpush1.bf16.msra.mxu0 0
          %1008 = vmatprep.subr.bf16.mxu0 0
          %1009 = vmatpush1.bf16.msra.mxu0 0
          %1010 = vmatprep.subr.bf16.mxu0 0
          %1011 = vmatpush1.bf16.msra.mxu0 0
          %1012 = vmatprep.subr.bf16.mxu0 0
          %1013 = vmatpush1.bf16.msra.mxu0 %v996
          %1014 = vmatprep.subr.bf16.mxu0 0
          %1015 = vmatpush2.bf16.msra.mxu0 0
          %1016 = vmatprep.subr.bf16.mxu0 0
          %1017 = vmatpush2.bf16.msra.mxu0 0
          %1018 = vmatprep.subr.bf16.mxu0 0
          %1019 = vmatpush2.bf16.msra.mxu0 0
          %1020 = vmatprep.subr.bf16.mxu0 0
          %1021 = vmatpush2.bf16.msra.mxu0 0
          %1022 = vmatprep.subr.bf16.mxu0 0
          %1023 = vmatpush2.bf16.msra.mxu0 0
          %1024 = vmatprep.subr.bf16.mxu0 0
          %1025 = vmatpush2.bf16.msra.mxu0 0
          %1026 = vmatprep.subr.bf16.mxu0 0
          %1027 = vmatpush2.bf16.msra.mxu0 0
          %1028 = vmatprep.subr.bf16.mxu0 0
          %1029 = vmatpush2.bf16.msra.mxu0 0
          %1030 = vmatprep.mubr.bf16.mxu0 0
          %1031 = vmatmul.mubr.bf16.gmra.mxu0 %v993
          %v1032 = vpop.f32.mrf.mxu0
          %v1033 = vadd.f32 0.0, %v1032
          %v1034 = vpop.f32.mrf.mxu0
          %v1035 = vpop.f32.mrf.mxu0
          %v1036 = vpop.f32.mrf.mxu0
          %1037 = vdwg.mxu0
          %v1038 = vpack.c.bf16 %v1033, %v1033
          %v1040 = vunpack.c.l.b16 %v1038
          %v1041 = vpack.c.b16 %v1040, %v1040
          %1042 = vrot.lane.b32.xlu0 %v1041, 24
          %v1043 = vpop.permute.xlu0 %1042
          %vm1045 = vcmask 257216
          %1046 = vst.msk [vmem:[#allocation2] sm:$0xf] %vm1045, %v1043
          %v1047 = vld [vmem:[#allocation2] sm:$0xf]
          %v1048 = vld [vmem:[%s3] sm:$0xf]
          %v1049 = vld [vmem:[%s3 + $0x4] sm:$0xf]
          %v1050 = vld [vmem:[%s3 + $0x8] sm:$0xf]
          %v1051 = vld [vmem:[%s3 + $0xc] sm:$0xf]
          %v1052 = vld [vmem:[%s4] sm:$0x1]
          %v1054 = vlaneseq
          %v1055 = vshrl.u32 %v1054, 7
          %v1056 = vsub.s32 0, %v1055
          %v1057 = vrot.slane %v1052, %v1056
          %v1063 = vunpack.c.l.b16 %v1048
          %v1064 = vunpack.c.l.b16 %v1049
          %v1065 = vunpack.c.l.b16 %v1050
          %v1066 = vunpack.c.l.b16 %v1051
          %v1067 = vpack.c.b16 %v1064, %v1063
          %v1068 = vpack.c.b16 %v1066, %v1065
          %v1072 = vsel %vm531, %v1047, 0
          %1074 = vmatprep.subr.bf16.mxu0 0
          %1075 = vmatpush1.bf16.msra.mxu0 0
          %1076 = vmatprep.subr.bf16.mxu0 0
          %1077 = vmatpush1.bf16.msra.mxu0 0
          %1078 = vmatprep.subr.bf16.mxu0 0
          %1079 = vmatpush1.bf16.msra.mxu0 0
          %1080 = vmatprep.subr.bf16.mxu0 0
          %1081 = vmatpush1.bf16.msra.mxu0 0
          %1082 = vmatprep.subr.bf16.mxu0 0
          %1083 = vmatpush1.bf16.msra.mxu0 0
          %1084 = vmatprep.subr.bf16.mxu0 0
          %1085 = vmatpush1.bf16.msra.mxu0 0
          %1086 = vmatprep.subr.bf16.mxu0 0
          %1087 = vmatpush1.bf16.msra.mxu0 %v1068
          %1088 = vmatprep.subr.bf16.mxu0 0
          %1089 = vmatpush1.bf16.msra.mxu0 %v1067
          %1090 = vmatprep.subr.bf16.mxu0 0
          %1091 = vmatpush2.bf16.msra.mxu0 0
          %1092 = vmatprep.subr.bf16.mxu0 0
          %1093 = vmatpush2.bf16.msra.mxu0 0
          %1094 = vmatprep.subr.bf16.mxu0 0
          %1095 = vmatpush2.bf16.msra.mxu0 0
          %1096 = vmatprep.subr.bf16.mxu0 0
          %1097 = vmatpush2.bf16.msra.mxu0 0
          %1098 = vmatprep.subr.bf16.mxu0 0
          %1099 = vmatpush2.bf16.msra.mxu0 0
          %1100 = vmatprep.subr.bf16.mxu0 0
          %1101 = vmatpush2.bf16.msra.mxu0 0
          %1102 = vmatprep.subr.bf16.mxu0 0
          %1103 = vmatpush2.bf16.msra.mxu0 0
          %1104 = vmatprep.subr.bf16.mxu0 0
          %1105 = vmatpush2.bf16.msra.mxu0 0
          %1106 = vmatprep.mubr.bf16.mxu0 0
          %1107 = vmatmul.mubr.bf16.gmra.mxu0 %v1072
          %v1108 = vpop.f32.mrf.mxu0
          %v1109 = vadd.f32 %v1057, %v1108
          %v1110 = vpop.f32.mrf.mxu0
          %v1111 = vpop.f32.mrf.mxu0
          %v1112 = vpop.f32.mrf.mxu0
          %1113 = vdwg.mxu0
          %v1114 = vadd.f32 %v506, %v1109
          %v1115 = vld [vmem:[%s5] sm:$0x1]
          %v1116 = vld [vmem:[%s6] sm:$0x1]
          %v1117 = vsel %vm531, %v1114, 0.0
          %1118 = vadd.xlane.f32.xlu0 %v1117
          %v1119 = vpop.xlane.xlu0 %1118
          %v1120 = vrcp.pop 32.0
          %v1121 = vmul.f32 %v1119, %v1120
          %v1122 = vsub.f32 %v1114, %v1121
          %v1123 = vmul.f32 %v1122, %v1122
          %v1124 = vsel %vm531, %v1123, 0.0
          %1125 = vadd.xlane.f32.xlu0 %v1124
          %v1126 = vpop.xlane.xlu0 %1125
          %v1127 = vmul.f32 %v1126, %v1120
          %v1128 = vadd.f32 %v1127, 1e-05
          %v1129 = vrsqrt.pop %v1128
          %v1130 = vmul.f32 %v1122, %v1129
          %v1132 = vlaneseq
          %v1133 = vshrl.u32 %v1132, 7
          %v1134 = vsub.s32 0, %v1133
          %v1135 = vrot.slane %v1115, %v1134
          %v1137 = vmul.f32 %v1130, %v1135
          %v1139 = vlaneseq
          %v1140 = vshrl.u32 %v1139, 7
          %v1141 = vsub.s32 0, %v1140
          %v1142 = vrot.slane %v1116, %v1141
          %v1144 = vadd.f32 %v1137, %v1142
          %1145 = vst.msk [vmem:[#allocation3] sm:$0xff] %vm531, %v1144
          %1146 = vst.msk [vmem:[#allocation4] sm:$0xff] %vm531, 0.0
        $region76: #{tpu_custom_call.1} parent=71 // pred_fallthru
          _
        %v1147 = vld [vmem:[#allocation3] sm:$0xff]
        %v1148 = vpack.c.bf16 %v1147, %v1147
        %v1149 = vld [vmem:[%s491] sm:$0xf]
        %v1150 = vld [vmem:[%s491 + $0x4] sm:$0xf]
        %v1151 = vld [vmem:[%s491 + $0x8] sm:$0xf]
        %v1152 = vld [vmem:[%s491 + $0xc] sm:$0xf]
        %v1153 = vld [vmem:[%s494] sm:$0x1]
        %v1155 = vlaneseq
        %v1156 = vshrl.u32 %v1155, 7
        %v1157 = vsub.s32 0, %v1156
        %v1158 = vrot.slane %v1153, %v1157
        %v1164 = vunpack.c.l.b16 %v1149
        %v1165 = vunpack.c.l.b16 %v1150
        %v1166 = vunpack.c.l.b16 %v1151
        %v1167 = vunpack.c.l.b16 %v1152
        %v1168 = vpack.c.b16 %v1165, %v1164
        %v1169 = vpack.c.b16 %v1167, %v1166
        %vm1172 = vcmask 261120
        %v1174 = vsel %vm1172, %v1148, 0
        %1176 = vmatprep.subr.bf16.mxu0 0
        %1177 = vmatpush1.bf16.msra.mxu0 0
        %1178 = vmatprep.subr.bf16.mxu0 0
        %1179 = vmatpush1.bf16.msra.mxu0 0
        %1180 = vmatprep.subr.bf16.mxu0 0
        %1181 = vmatpush1.bf16.msra.mxu0 0
        %1182 = vmatprep.subr.bf16.mxu0 0
        %1183 = vmatpush1.bf16.msra.mxu0 0
        %1184 = vmatprep.subr.bf16.mxu0 0
        %1185 = vmatpush1.bf16.msra.mxu0 0
        %1186 = vmatprep.subr.bf16.mxu0 0
        %1187 = vmatpush1.bf16.msra.mxu0 0
        %1188 = vmatprep.subr.bf16.mxu0 0
        %1189 = vmatpush1.bf16.msra.mxu0 %v1169
        %1190 = vmatprep.subr.bf16.mxu0 0
        %1191 = vmatpush1.bf16.msra.mxu0 %v1168
        %1192 = vmatprep.subr.bf16.mxu0 0
        %1193 = vmatpush2.bf16.msra.mxu0 0
        %1194 = vmatprep.subr.bf16.mxu0 0
        %1195 = vmatpush2.bf16.msra.mxu0 0
        %1196 = vmatprep.subr.bf16.mxu0 0
        %1197 = vmatpush2.bf16.msra.mxu0 0
        %1198 = vmatprep.subr.bf16.mxu0 0
        %1199 = vmatpush2.bf16.msra.mxu0 0
        %1200 = vmatprep.subr.bf16.mxu0 0
        %1201 = vmatpush2.bf16.msra.mxu0 0
        %1202 = vmatprep.subr.bf16.mxu0 0
        %1203 = vmatpush2.bf16.msra.mxu0 0
        %1204 = vmatprep.subr.bf16.mxu0 0
        %1205 = vmatpush2.bf16.msra.mxu0 0
        %1206 = vmatprep.subr.bf16.mxu0 0
        %1207 = vmatpush2.bf16.msra.mxu0 0
        %1208 = vmatprep.mubr.bf16.mxu0 0
        %1209 = vmatmul.mubr.bf16.gmra.mxu0 %v1174
        %v1210 = vpop.f32.mrf.mxu0
        %v1211 = vadd.f32 %v1158, %v1210
        %v1212 = vpop.f32.mrf.mxu0
        %v1213 = vpop.f32.mrf.mxu0
        %v1214 = vpop.f32.mrf.mxu0
        %1215 = vdwg.mxu0
        %v1216 = vmax.f32 %v1211, 0.0
        %v1217 = vld [vmem:[#allocation4] sm:$0xff]
        %v1218 = vpack.c.bf16 %v1216, %v1216
        %v1219 = vld [vmem:[%s499] sm:$0xf]
        %v1220 = vld [vmem:[%s499 + $0x4] sm:$0xf]
        %v1221 = vld [vmem:[%s499 + $0x8] sm:$0xf]
        %v1222 = vld [vmem:[%s499 + $0xc] sm:$0xf]
        %v1223 = vld [vmem:[%s499 + $0x10] sm:$0xf]
        %v1224 = vld [vmem:[%s499 + $0x14] sm:$0xf]
        %v1225 = vld [vmem:[%s499 + $0x18] sm:$0xf]
        %v1226 = vld [vmem:[%s499 + $0x1c] sm:$0xf]
        %v1227 = vld [vmem:[%s499 + $0x20] sm:$0xf]
        %v1228 = vld [vmem:[%s499 + $0x24] sm:$0xf]
        %v1229 = vld [vmem:[%s499 + $0x28] sm:$0xf]
        %v1230 = vld [vmem:[%s499 + $0x2c] sm:$0xf]
        %v1231 = vld [vmem:[%s499 + $0x30] sm:$0xf]
        %v1232 = vld [vmem:[%s499 + $0x34] sm:$0xf]
        %v1233 = vld [vmem:[%s499 + $0x38] sm:$0xf]
        %v1234 = vld [vmem:[%s499 + $0x3c] sm:$0xf]
        %v1251 = vunpack.c.l.b16 %v1219
        %v1252 = vunpack.c.l.b16 %v1220
        %v1253 = vunpack.c.l.b16 %v1221
        %v1254 = vunpack.c.l.b16 %v1222
        %v1255 = vunpack.c.l.b16 %v1223
        %v1256 = vunpack.c.l.b16 %v1224
        %v1257 = vunpack.c.l.b16 %v1225
        %v1258 = vunpack.c.l.b16 %v1226
        %v1259 = vunpack.c.l.b16 %v1227
        %v1260 = vunpack.c.l.b16 %v1228
        %v1261 = vunpack.c.l.b16 %v1229
        %v1262 = vunpack.c.l.b16 %v1230
        %v1263 = vunpack.c.l.b16 %v1231
        %v1264 = vunpack.c.l.b16 %v1232
        %v1265 = vunpack.c.l.b16 %v1233
        %v1266 = vunpack.c.l.b16 %v1234
        %v1267 = vpack.c.b16 %v1252, %v1251
        %v1268 = vpack.c.b16 %v1254, %v1253
        %v1269 = vpack.c.b16 %v1256, %v1255
        %v1270 = vpack.c.b16 %v1258, %v1257
        %v1271 = vpack.c.b16 %v1260, %v1259
        %v1272 = vpack.c.b16 %v1262, %v1261
        %v1273 = vpack.c.b16 %v1264, %v1263
        %v1274 = vpack.c.b16 %v1266, %v1265
        %1283 = vmatprep.subr.bf16.mxu0 0
        %1284 = vmatpush1.bf16.msra.mxu0 %v1274
        %1285 = vmatprep.subr.bf16.mxu0 0
        %1286 = vmatpush1.bf16.msra.mxu0 %v1273
        %1287 = vmatprep.subr.bf16.mxu0 0
        %1288 = vmatpush1.bf16.msra.mxu0 %v1272
        %1289 = vmatprep.subr.bf16.mxu0 0
        %1290 = vmatpush1.bf16.msra.mxu0 %v1271
        %1291 = vmatprep.subr.bf16.mxu0 0
        %1292 = vmatpush1.bf16.msra.mxu0 %v1270
        %1293 = vmatprep.subr.bf16.mxu0 0
        %1294 = vmatpush1.bf16.msra.mxu0 %v1269
        %1295 = vmatprep.subr.bf16.mxu0 0
        %1296 = vmatpush1.bf16.msra.mxu0 %v1268
        %1297 = vmatprep.subr.bf16.mxu0 0
        %1298 = vmatpush1.bf16.msra.mxu0 %v1267
        %1299 = vmatprep.subr.bf16.mxu0 0
        %1300 = vmatpush2.bf16.msra.mxu0 0
        %1301 = vmatprep.subr.bf16.mxu0 0
        %1302 = vmatpush2.bf16.msra.mxu0 0
        %1303 = vmatprep.subr.bf16.mxu0 0
        %1304 = vmatpush2.bf16.msra.mxu0 0
        %1305 = vmatprep.subr.bf16.mxu0 0
        %1306 = vmatpush2.bf16.msra.mxu0 0
        %1307 = vmatprep.subr.bf16.mxu0 0
        %1308 = vmatpush2.bf16.msra.mxu0 0
        %1309 = vmatprep.subr.bf16.mxu0 0
        %1310 = vmatpush2.bf16.msra.mxu0 0
        %1311 = vmatprep.subr.bf16.mxu0 0
        %1312 = vmatpush2.bf16.msra.mxu0 0
        %1313 = vmatprep.subr.bf16.mxu0 0
        %1314 = vmatpush2.bf16.msra.mxu0 0
        %1315 = vmatprep.mubr.bf16.mxu0 0
        %1316 = vmatmul.mubr.bf16.gmra.mxu0 %v1218
        %v1317 = vpop.f32.mrf.mxu0
        %v1318 = vadd.f32 0.0, %v1317
        %v1319 = vpop.f32.mrf.mxu0
        %v1320 = vpop.f32.mrf.mxu0
        %v1321 = vpop.f32.mrf.mxu0
        %1322 = vdwg.mxu0
        %v1323 = vadd.f32 %v1217, %v1318
        %1324 = vst.msk [vmem:[#allocation4] sm:$0xff] %vm1172, %v1323
        // Predicated region
        $region77: #{tpu_custom_call.1} parent=71 // pred_check
          %p1325 = pneg %p502
        $region78: #{tpu_custom_call.1} parent=71 // pred_check_branch
          %1327 = sbr.rel (%p1325) target = $region80
        $region79: #{tpu_custom_call.1} parent=71 // pred_region
          %v1328 = vld [vmem:[#allocation4] sm:$0xff]
          %v1329 = vld [vmem:[%s10] sm:$0x1]
          %v1331 = vlaneseq
          %v1332 = vshrl.u32 %v1331, 7
          %v1333 = vsub.s32 0, %v1332
          %v1334 = vrot.slane %v1329, %v1333
          %v1336 = vadd.f32 %v1328, %v1334
          %v1337 = vadd.f32 %v1147, %v1336
          %v1338 = vld [vmem:[%s11] sm:$0x1]
          %v1339 = vld [vmem:[%s12] sm:$0x1]
          %v1340 = vsel %vm1172, %v1337, 0.0
          %1341 = vadd.xlane.f32.xlu0 %v1340
          %v1342 = vpop.xlane.xlu0 %1341
          %v1343 = vrcp.pop 32.0
          %v1344 = vmul.f32 %v1342, %v1343
          %v1345 = vsub.f32 %v1337, %v1344
          %v1346 = vmul.f32 %v1345, %v1345
          %v1347 = vsel %vm1172, %v1346, 0.0
          %1348 = vadd.xlane.f32.xlu0 %v1347
          %v1349 = vpop.xlane.xlu0 %1348
          %v1350 = vmul.f32 %v1349, %v1343
          %v1351 = vadd.f32 %v1350, 1e-05
          %v1352 = vrsqrt.pop %v1351
          %v1353 = vmul.f32 %v1345, %v1352
          %v1355 = vlaneseq
          %v1356 = vshrl.u32 %v1355, 7
          %v1357 = vsub.s32 0, %v1356
          %v1358 = vrot.slane %v1338, %v1357
          %v1360 = vmul.f32 %v1353, %v1358
          %v1362 = vlaneseq
          %v1363 = vshrl.u32 %v1362, 7
          %v1364 = vsub.s32 0, %v1363
          %v1365 = vrot.slane %v1339, %v1364
          %v1367 = vadd.f32 %v1360, %v1365
          %1368 = vst.msk [vmem:[%s483] sm:$0xff] %vm1172, %v1367
        $region80: #{tpu_custom_call.1} parent=71 // pred_fallthru
          _
        %s1369 = sand.u32 %s340, 1
        %s1370 = scalar_lea.sflag [#allocation6], %s1369
        %s1371 = sand.u32 %s340, 1
        %s1372 = smul.addr %s1371, 8
        %s1373 = scalar_lea.vmem [#allocation5], %s1372
        // Predicated region
        $region81: #{tpu_custom_call.1} parent=71 // pred_check
          %p1374 = pneg %p350
        $region82: #{tpu_custom_call.1} parent=71 // pred_check_branch
          %1376 = sbr.rel (%p1374) target = $region84
        $region83: #{tpu_custom_call.1} parent=71 // pred_region
          %s1378 = ssub.s32 128, 128
          %1379 = vsyncadd %s1370, %s1378
          %s1380 = smul.addr %s31, 128
          %s1381 = scalar_lea.hbm %s13, %s1380
          %s1383 = sshll.u32 %s1373, 4
          %s1384 = int_to_ptr.vmem [resolvable:$true] %s1383
          %1386 = dma.vmem_to_hbm [thread:$0]  %s1384, 128, %s1381, %s1370
        $region84: #{tpu_custom_call.1} parent=71 // pred_fallthru
          _
      $region72: #{tpu_custom_call.1} parent=5 // pred_fallthru
        _
      %p1387 = scmp.le.s32.totalorder 2, %s22
      // Predicated region
      $region85: #{tpu_custom_call.1} parent=5 // pred_check
        %p1388 = pneg %p1387
      $region86: #{tpu_custom_call.1} parent=5 // pred_check_branch
        %1390 = sbr.rel (%p1388) target = $region88
      $region87: #{tpu_custom_call.1} parent=5 // pred_region
        %s1391 = ssub.s32 %s22, 2
        // Predicated region
        $region89: #{tpu_custom_call.1} parent=87 // pred_check
          %p1392 = pneg %p356
        $region90: #{tpu_custom_call.1} parent=87 // pred_check_branch
          %1394 = sbr.rel (%p1392) target = $region92
        $region91: #{tpu_custom_call.1} parent=87 // pred_region
          %s1395 = sand.u32 %s341, 1
          %s1396 = scalar_lea.sflag [#allocation6], %s1395
          %s1397 = sand.u32 %s341, 1
          %s1398 = smul.addr %s1397, 8
          %s1399 = scalar_lea.vmem [#allocation5], %s1398
          %1400 = dma.done %s1396, 128
        $region92: #{tpu_custom_call.1} parent=87 // pred_fallthru
          _
      $region88: #{tpu_custom_call.1} parent=5 // pred_fallthru
        _
    $region6: #{tpu_custom_call.1} parent=1 // loop_footer
      %s26 = sadd.s32 1, %s22
    $region7: #{tpu_custom_call.1} parent=1 // loop_footer_branch
      %21 = sbr.rel target = $region3
    $region8: #{tpu_custom_call.1} parent=1 // loop_exit
      _
    %1401 = vsyncpa [#allocation6], 1
    %s1402 = scalar_lea.sflag [#allocation6], 1
    %1403 = vsyncpa %s1402, 1

</llo_original>
